<compile_context>
chip_gen: v7x
topology: tpu7x:2x2x1
jax: 0.10.0
libtpu: 0.0.40
codegen_flags: <defaults>
</compile_context>

<pallas_src>
import functools
import math

import jax
import jax.numpy as jnp
from jax.experimental import pallas as pl
from jax.experimental.pallas import tpu as pltpu

LN_EPS = 1e-5
_HIGHEST = jax.lax.Precision.HIGHEST


# ----------------------------------------------------------------------------- VMEM budget
def _vmem_capacity_bytes():
    try:
        cap = int(pltpu.get_tpu_info().vmem_capacity_bytes)
        if cap > 0:
            return cap
    except Exception:
        pass
    try:  # fallback: guess generation from the device kind string
        kind = jax.devices()[0].device_kind.lower()
        if "v7" in kind:
            return 64 * 1024 * 1024
    except Exception:
        pass
    return 128 * 1024 * 1024


def _vmem_limits():
    cap = _vmem_capacity_bytes()
    # ~48 MiB scoped limit on v7x (64 MiB physical/TC), ~96 MiB on v5e/v6e (128 MiB).
    limit = min(cap * 3 // 4, 100 * 1024 * 1024)
    budget = max(limit - 6 * 1024 * 1024, 8 * 1024 * 1024)  # headroom for compiler scratch
    return int(limit), int(budget)


_VMEM_LIMIT_BYTES, _VMEM_TILE_BUDGET = _vmem_limits()


# ----------------------------------------------------------------------------- utils
def _round_up(x, m):
    return (x + m - 1) // m * m


def _pick_row_tile(n_rows, pipelined_row_bytes, scratch_row_bytes, resident_bytes,
                   max_tile=1024):
    """Largest 8-row-aligned row tile that fits the generation-aware VMEM budget.

    Pipelined streams are double-buffered (x2); `resident_bytes` must already include the
    x2 factor Pallas applies even to constant-index-map blocks.
    """
    avail = max(_VMEM_TILE_BUDGET - resident_bytes, 0)
    per_row = 2 * pipelined_row_bytes + scratch_row_bytes
    t = avail // max(per_row, 1)
    t = min(t, max_tile, _round_up(n_rows, 8))
    t = max(8, (t // 8) * 8)
    return int(t)


def _layernorm_f32(z, gamma, beta):
    """LayerNorm over the last axis, centered two-pass variance, all f32."""
    mean = jnp.mean(z, axis=-1, keepdims=True)
    c = z - mean
    var = jnp.mean(c * c, axis=-1, keepdims=True)
    inv = jax.lax.rsqrt(var + LN_EPS)
    return c * inv * gamma + beta


def _erf(x):
    # Abramowitz & Stegun 7.1.26 (max abs err ~1.5e-7); exp + reciprocal go to the EUP.
    ax = jnp.abs(x)
    t = pl.reciprocal(1.0 + 0.3275911 * ax, approx=True)
    poly = ((((1.061405429 * t - 1.453152027) * t + 1.421413741) * t
             - 0.284496736) * t + 0.254829592) * t
    y = 1.0 - poly * jnp.exp(-ax * ax)
    return jnp.where(x >= 0.0, y, -y)


def _gelu_exact(x):
    # matches PyTorch nn.GELU() default (exact, erf-based)
    return 0.5 * x * (1.0 + _erf(x * (1.0 / math.sqrt(2.0))))


# ------------------------------------------------- kernel 1: fused QKV proj + attention
def _attn_kernel(mt_ref, vis_ref, wq_ref, bq_ref, wkv_ref, bkv_ref, o_ref, *,
                 num_heads, scale):
    D = o_ref.shape[-1]
    dk = D // num_heads
    mt = mt_ref[0].astype(jnp.bfloat16)     # (Sm, D) query input  (mask tokens)
    vis = vis_ref[0].astype(jnp.bfloat16)   # (Sv, D) key/value input (visible tokens)

    # Projections on the MXU: single-pass bf16 x bf16 -> f32; K|V weights concatenated.
    q = jnp.dot(mt, wq_ref[...], preferred_element_type=jnp.float32) + bq_ref[...]
    kv = jnp.dot(vis, wkv_ref[...], preferred_element_type=jnp.float32) + bkv_ref[...]
    q = q * scale                            # fold 1/sqrt(dk) into q (cheaper than scores)
    k = kv[:, :D]
    v = kv[:, D:]

    outs = []
    for h in range(num_heads):               # static unroll; all heads in one grid step
        lo, hi = h * dk, (h + 1) * dk
        qh = q[:, lo:hi].astype(jnp.bfloat16)
        kh = k[:, lo:hi].astype(jnp.bfloat16)
        vh = v[:, lo:hi].astype(jnp.bfloat16)
        s = jax.lax.dot_general(qh, kh, (((1,), (1,)), ((), ())),
                                preferred_element_type=jnp.float32)    # (Sm, Sv)
        # TODO(synk): optional attention mask (masked_fill) not implemented; mask must be None.
        m = jnp.max(s, axis=-1, keepdims=True)
        e = jnp.exp(s - m)
        p = e * pl.reciprocal(jnp.sum(e, axis=-1, keepdims=True), approx=True)
        outs.append(jnp.dot(p.astype(jnp.bfloat16), vh,
                            preferred_element_type=jnp.float32))        # (Sm, dk)
    ctx = jnp.concatenate(outs, axis=-1)     # (Sm, D) — lane-dense store
    o_ref[0] = ctx.astype(o_ref.dtype)


@functools.partial(jax.jit, static_argnames=("num_heads",))
def fused_cross_attention(rep_mask_token, rep_visible, wq, bq, wkv, bkv, *, num_heads):
    """ctx[b] = per-head softmax attention (q from mask tokens, k/v from visible tokens)."""
    B, Sm, D = rep_mask_token.shape
    Sv = rep_visible.shape[1]
    scale = 1.0 / math.sqrt(D // num_heads)
    itemsize = jnp.dtype(rep_mask_token.dtype).itemsize
    resident = 2 * ((wq.size + wkv.size) * jnp.dtype(wq.dtype).itemsize
                    + (bq.size + bkv.size) * 4)
    cost = pl.CostEstimate(
        flops=int(2 * B * Sm * D * D + 4 * B * Sv * D * D + 4 * B * Sm * Sv * D),
        transcendentals=int(B * num_heads * Sm * (Sv + 1)),
        bytes_accessed=int(itemsize * B * (2 * Sm * D + Sv * D) + resident))
    # TODO(synk): full Sv keys held per block — very long key sequences would need a
    # flash-style online-softmax tiling over Sv.
    return pl.pallas_call(
        functools.partial(_attn_kernel, num_heads=num_heads, scale=scale),
        out_shape=jax.ShapeDtypeStruct((B, Sm, D), rep_mask_token.dtype),
        grid_spec=pltpu.PrefetchScalarGridSpec(
            num_scalar_prefetch=0,
            grid=(B,),
            in_specs=[
                pl.BlockSpec((1, Sm, D), lambda b: (b, 0, 0)),
                pl.BlockSpec((1, Sv, D), lambda b: (b, 0, 0)),
                # constant block index -> fetched once, stays VMEM-resident
                pl.BlockSpec((D, D), lambda b: (0, 0)),
                pl.BlockSpec((1, D), lambda b: (0, 0)),
                pl.BlockSpec((D, 2 * D), lambda b: (0, 0)),
                pl.BlockSpec((1, 2 * D), lambda b: (0, 0)),
            ],
            out_specs=pl.BlockSpec((1, Sm, D), lambda b: (b, 0, 0)),
        ),
        compiler_params=pltpu.CompilerParams(
            dimension_semantics=("parallel",),
            vmem_limit_bytes=_VMEM_LIMIT_BYTES),
        cost_estimate=cost,
    )(rep_mask_token, rep_visible, wq, bq, wkv, bkv)


# --------------------- kernel 2: out-proj + residual + LN1 + FFN + residual + LN2 (fused)
def _proj_ln_ffn_ln_kernel(a_ref, ctx_ref, res_ref, wo_ref, bo_ref, g1_ref, be1_ref,
                           w1_ref, b1_ref, w2_ref, b2_ref, g2_ref, be2_ref, o_ref):
    a1 = a_ref[0]
    a2 = a_ref[1]
    # skipconnect1: out-projection + residual + LayerNorm   (dropout = identity, eval mode)
    y = jnp.dot(ctx_ref[...].astype(jnp.bfloat16), wo_ref[...],
                preferred_element_type=jnp.float32) + bo_ref[...]
    z1 = res_ref[...].astype(jnp.float32) + a1 * y
    x1 = _layernorm_f32(z1, g1_ref[...], be1_ref[...])
    # skipconnect2: Linear -> GELU -> Linear + residual + LayerNorm
    h = jnp.dot(x1.astype(jnp.bfloat16), w1_ref[...],
                preferred_element_type=jnp.float32) + b1_ref[...]
    h = _gelu_exact(h)
    y2 = jnp.dot(h.astype(jnp.bfloat16), w2_ref[...],
                 preferred_element_type=jnp.float32) + b2_ref[...]
    z2 = x1 + a2 * y2
    o_ref[...] = _layernorm_f32(z2, g2_ref[...], be2_ref[...]).astype(o_ref.dtype)


@jax.jit
def fused_postattention(ctx, residual, a_pair, wo, bo, g1, be1, w1, b1, w2, b2, g2, be2):
    """LN2(x1 + a2*FFN(x1)) with x1 = LN1(residual + a1*(ctx @ Wo + bo)), row-tiled."""
    orig_shape = residual.shape
    D = orig_shape[-1]
    F = w1.shape[1]
    ctx2 = ctx.reshape(-1, D)
    res2 = residual.reshape(-1, D)
    R = ctx2.shape[0]
    itemsize = jnp.dtype(ctx.dtype).itemsize

    # Resident VMEM: bf16 weights + f32 vectors, x2 because Pallas double-buffers even
    # constant-index-map blocks.
    # TODO(synk): Buffered(1)/manual weight staging + an F-tiled accumulator grid axis
    # would be needed when the (doubled) resident weights exceed the budget at very large
    # d_model/d_ffn; at the sizes exercised here the weights fit easily.
    wbytes = (wo.size + w1.size + w2.size) * jnp.dtype(wo.dtype).itemsize
    vbytes = (bo.size + g1.size + be1.size + b1.size + b2.size + g2.size + be2.size) * 4
    resident = 2 * (wbytes + vbytes)
    row_tile = _pick_row_tile(
        R,
        pipelined_row_bytes=3 * D * itemsize,      # ctx + residual in, out row
        scratch_row_bytes=(F + 6 * D) * 4,         # f32 intermediates per row
        resident_bytes=resident)

    cost = pl.CostEstimate(
        flops=int(2 * R * D * D + 4 * R * D * F + 30 * R * F + 20 * R * D),
        transcendentals=int(2 * R * F + 4 * R),
        bytes_accessed=int(itemsize * 3 * R * D + resident // 2))
    out = pl.pallas_call(
        _proj_ln_ffn_ln_kernel,
        out_shape=jax.ShapeDtypeStruct((R, D), residual.dtype),
        grid_spec=pltpu.PrefetchScalarGridSpec(
            num_scalar_prefetch=0,
            grid=(pl.cdiv(R, row_tile),),          # no padding: final block is clipped
            in_specs=[
                pl.BlockSpec((2,), lambda i: (0,), memory_space=pltpu.MemorySpace.SMEM),
                pl.BlockSpec((row_tile, D), lambda i: (i, 0)),
                pl.BlockSpec((row_tile, D), lambda i: (i, 0)),
                # constant block index -> fetched once, stays VMEM-resident
                pl.BlockSpec((D, D), lambda i: (0, 0)),
                pl.BlockSpec((1, D), lambda i: (0, 0)),
                pl.BlockSpec((1, D), lambda i: (0, 0)),
                pl.BlockSpec((1, D), lambda i: (0, 0)),
                pl.BlockSpec((D, F), lambda i: (0, 0)),
                pl.BlockSpec((1, F), lambda i: (0, 0)),
                pl.BlockSpec((F, D), lambda i: (0, 0)),
                pl.BlockSpec((1, D), lambda i: (0, 0)),
                pl.BlockSpec((1, D), lambda i: (0, 0)),
                pl.BlockSpec((1, D), lambda i: (0, 0)),
            ],
            out_specs=pl.BlockSpec((row_tile, D), lambda i: (i, 0)),
        ),
        compiler_params=pltpu.CompilerParams(
            dimension_semantics=("parallel",),
            vmem_limit_bytes=_VMEM_LIMIT_BYTES),
        cost_estimate=cost,
    )(a_pair, ctx2, res2, wo, bo, g1, be1, w1, b1, w2, b2, g2, be2)
    return out.reshape(orig_shape)


# ---------------------------------------------------------------------------- module
class CrossAttnTRMBlockPallas:
    """JAX/Pallas port of the PyTorch CrossAttnTRMBlock (eval mode)."""

    def __init__(self, d_model, attn_heads, d_ffn, enable_res_parameter, dropout=0.1, *, key):
        assert d_model % attn_heads == 0
        self.d_model, self.h = d_model, attn_heads
        self.d_k, self.d_ffn = d_model // attn_heads, d_ffn
        ks = jax.random.split(key, 12)

        def linear_init(kw, kb, fan_in, fan_out):
            bound = 1.0 / math.sqrt(fan_in)
            w = jax.random.uniform(kw, (fan_in, fan_out), jnp.float32, -bound, bound)
            b = jax.random.uniform(kb, (fan_out,), jnp.float32, -bound, bound)
            return w, b

        self.wq, self.bq = linear_init(ks[0], ks[1], d_model, d_model)
        self.wk, self.bk = linear_init(ks[2], ks[3], d_model, d_model)
        self.wv, self.bv = linear_init(ks[4], ks[5], d_model, d_model)
        self.wo, self.bo = linear_init(ks[6], ks[7], d_model, d_model)
        self.w1, self.b1 = linear_init(ks[8], ks[9], d_model, d_ffn)
        self.w2, self.b2 = linear_init(ks[10], ks[11], d_ffn, d_model)
        self.ln1_g = jnp.ones((d_model,), jnp.float32)
        self.ln1_b = jnp.zeros((d_model,), jnp.float32)
        self.ln2_g = jnp.ones((d_model,), jnp.float32)
        self.ln2_b = jnp.zeros((d_model,), jnp.float32)
        self.enable = enable_res_parameter
        # PyTorch init: residual parameter a = 1e-8 when enabled; 1.0 == plain residual.
        self.a1 = jnp.float32(1e-8) if enable_res_parameter else jnp.float32(1.0)
        self.a2 = jnp.float32(1e-8) if enable_res_parameter else jnp.float32(1.0)

        # Kernel-side parameter copies: bf16 weights (single-pass MXU, half the resident
        # VMEM / HBM traffic); K|V weights concatenated into one (D, 2D) matmul (fills the
        # 256-wide MXU on v6e/v7x).  Q stays separate: its input (mask tokens) differs.
        self.wq_k = self.wq.astype(jnp.bfloat16)
        self.bq_k = self.bq.reshape(1, d_model)
        self.wkv_k = jnp.concatenate([self.wk, self.wv], axis=1).astype(jnp.bfloat16)
        self.bkv_k = jnp.concatenate([self.bk, self.bv]).reshape(1, 2 * d_model)
        self.wo_k = self.wo.astype(jnp.bfloat16)
        self.bo_k = self.bo.reshape(1, d_model)
        self.w1_k = self.w1.astype(jnp.bfloat16)
        self.b1_k = self.b1.reshape(1, d_ffn)
        self.w2_k = self.w2.astype(jnp.bfloat16)
        self.b2_k = self.b2.reshape(1, d_model)
        # TODO(synk): dropout treated as identity (eval mode); training-mode dropout would
        # need pltpu.prng_random_bits inside the fused kernels.

    def __call__(self, rep_visible, rep_mask_token, mask=None):
        if mask is not None:
            # TODO(synk): attention mask (masked_fill) path not implemented in fused kernel.
            raise NotImplementedError("attention mask path not implemented")
        ctx = fused_cross_attention(rep_mask_token, rep_visible,
                                    self.wq_k, self.bq_k, self.wkv_k, self.bkv_k,
                                    num_heads=self.h)                      # Pallas kernel 1
        a_pair = jnp.stack([self.a1, self.a2]).astype(jnp.float32)
        return fused_postattention(ctx, rep_mask_token, a_pair,
                                   self.wo_k, self.bo_k,
                                   self.ln1_g.reshape(1, -1), self.ln1_b.reshape(1, -1),
                                   self.w1_k, self.b1_k, self.w2_k, self.b2_k,
                                   self.ln2_g.reshape(1, -1), self.ln2_b.reshape(1, -1))
                                                                            # Pallas kernel 2

    # Pure-JAX f32 reference mirroring the PyTorch forward (eval mode).
    def reference(self, rep_visible, rep_mask_token):
        B, Sv, D = rep_visible.shape
        Sm = rep_mask_token.shape[1]
        H, dk = self.h, self.d_k

        def lin(x, w, b):
            return jnp.einsum("bsd,de->bse", x, w, precision=_HIGHEST) + b

        def split(x, S):
            return jnp.transpose(x.reshape(B, S, H, dk), (0, 2, 1, 3))

        q = split(lin(rep_mask_token, self.wq, self.bq), Sm)
        k = split(lin(rep_visible, self.wk, self.bk), Sv)
        v = split(lin(rep_visible, self.wv, self.bv), Sv)
        s = jnp.einsum("bhqd,bhkd->bhqk", q, k, precision=_HIGHEST) / math.sqrt(dk)
        p = jax.nn.softmax(s, axis=-1)
        ctx = jnp.einsum("bhqk,bhkd->bhqd", p, v, precision=_HIGHEST)
        ctx = jnp.transpose(ctx, (0, 2, 1, 3)).reshape(B, Sm, D)
        attn_out = lin(ctx, self.wo, self.bo)

        def ln(z, g, b):
            mean = jnp.mean(z, axis=-1, keepdims=True)
            var = jnp.mean((z - mean) ** 2, axis=-1, keepdims=True)
            return (z - mean) / jnp.sqrt(var + LN_EPS) * g + b

        x1 = ln(rep_mask_token + self.a1 * attn_out, self.ln1_g, self.ln1_b)
        h = jax.nn.gelu(lin(x1, self.w1, self.b1), approximate=False)
        ffn_out = jnp.einsum("bsf,fd->bsd", h, self.w2, precision=_HIGHEST) + self.b2
        return ln(x1 + self.a2 * ffn_out, self.ln2_g, self.ln2_b)


if __name__ == "__main__":
    key = jax.random.PRNGKey(0)
    batch, seq_vis, seq_mask = 2, 16, 8
    d_model, heads, d_ffn = 128, 4, 256

    k1, k2, k3 = jax.random.split(key, 3)
    rep_visible = jax.random.normal(k1, (batch, seq_vis, d_model), jnp.float32)
    rep_mask_token = jax.random.normal(k2, (batch, seq_mask, d_model), jnp.float32)

    block = CrossAttnTRMBlockPallas(d_model, heads, d_ffn,
                                    enable_res_parameter=True, key=k3)
    # Use a non-trivial residual scale (as after training) so the attention / FFN
    # datapaths actually contribute to the output and are exercised by the check.
    block.a1 = jnp.float32(0.5)
    block.a2 = jnp.float32(0.5)

    out = block(rep_visible, rep_mask_token, mask=None)
    out = jax.block_until_ready(out)

    ref = block.reference(rep_visible, rep_mask_token)
    assert out.shape == (batch, seq_mask, d_model)
    max_err = float(jnp.max(jnp.abs(out - ref)))
    # tolerance covers single-pass bf16 MXU matmuls + erf polynomial + approx reciprocal
    assert jnp.allclose(out, ref, atol=2e-2, rtol=2e-2), \
        f"mismatch vs reference (max abs err {max_err})"

    print("KERNEL_OK")
</pallas_src>

<mosaic_0001>
module attributes {stable_mosaic.version = 11 : i64} {
  func.func @_attn_kernel(%arg0: i32, %arg1: memref<1x8x128xf32, #tpu.memory_space<vmem>>, %arg2: memref<1x16x128xf32, #tpu.memory_space<vmem>>, %arg3: memref<128x128xbf16, #tpu.memory_space<vmem>>, %arg4: memref<1x128xf32, #tpu.memory_space<vmem>>, %arg5: memref<128x256xbf16, #tpu.memory_space<vmem>>, %arg6: memref<1x256xf32, #tpu.memory_space<vmem>>, %arg7: memref<1x8x128xf32, #tpu.memory_space<vmem>>) attributes {dimension_semantics = [#tpu.dimension_semantics<parallel>], iteration_bounds = array<i64: 2>, scalar_prefetch = 0 : i64, scratch_operands = 0 : i64, tpu.core_type = #tpu.core_type<tc>, window_params = [{transform_indices = @transform_0, window_bounds = array<i64: 1, 8, 128>}, {transform_indices = @transform_1, window_bounds = array<i64: 1, 16, 128>}, {pipeline_mode = #tpu.pipeline_mode<synchronous>, transform_indices = @transform_2, window_bounds = array<i64: 128, 128>}, {pipeline_mode = #tpu.pipeline_mode<synchronous>, transform_indices = @transform_3, window_bounds = array<i64: 1, 128>}, {pipeline_mode = #tpu.pipeline_mode<synchronous>, transform_indices = @transform_4, window_bounds = array<i64: 128, 256>}, {pipeline_mode = #tpu.pipeline_mode<synchronous>, transform_indices = @transform_5, window_bounds = array<i64: 1, 256>}, {transform_indices = @transform_6, window_bounds = array<i64: 1, 8, 128>}]} {
    %c0 = arith.constant 0 : index
    %c0_0 = arith.constant 0 : index
    %c0_1 = arith.constant 0 : index
    %0 = vector.load %arg1[%c0, %c0_0, %c0_1] : memref<1x8x128xf32, #tpu.memory_space<vmem>>, vector<1x8x128xf32>
    %1 = vector.shape_cast %0 : vector<1x8x128xf32> to vector<8x128xf32>
    %2 = arith.truncf %1 : vector<8x128xf32> to vector<8x128xbf16>
    %c0_2 = arith.constant 0 : index
    %c0_3 = arith.constant 0 : index
    %c0_4 = arith.constant 0 : index
    %3 = vector.load %arg2[%c0_2, %c0_3, %c0_4] : memref<1x16x128xf32, #tpu.memory_space<vmem>>, vector<1x16x128xf32>
    %4 = vector.shape_cast %3 : vector<1x16x128xf32> to vector<16x128xf32>
    %5 = arith.truncf %4 : vector<16x128xf32> to vector<16x128xbf16>
    %c0_5 = arith.constant 0 : index
    %c0_6 = arith.constant 0 : index
    %6 = vector.load %arg3[%c0_5, %c0_6] : memref<128x128xbf16, #tpu.memory_space<vmem>>, vector<128x128xbf16>
    %cst = arith.constant dense<0.000000e+00> : vector<8x128xf32>
    %7 = tpu.matmul %2, %6, %cst {dimension_numbers = #tpu.dot_dimension_numbers<[1], [0], [0], [1], [0, 0, 1, 1], [], []>} : vector<8x128xbf16>, vector<128x128xbf16>, vector<8x128xf32> -> vector<8x128xf32>
    %c0_7 = arith.constant 0 : index
    %c0_8 = arith.constant 0 : index
    %8 = vector.load %arg4[%c0_7, %c0_8] : memref<1x128xf32, #tpu.memory_space<vmem>>, vector<1x128xf32>
    %9 = vector.broadcast %8 : vector<1x128xf32> to vector<8x128xf32>
    %10 = arith.addf %7, %9 : vector<8x128xf32>
    %c0_9 = arith.constant 0 : index
    %c0_10 = arith.constant 0 : index
    %11 = vector.load %arg5[%c0_9, %c0_10] : memref<128x256xbf16, #tpu.memory_space<vmem>>, vector<128x256xbf16>
    %cst_11 = arith.constant dense<0.000000e+00> : vector<16x256xf32>
    %12 = tpu.matmul %5, %11, %cst_11 {dimension_numbers = #tpu.dot_dimension_numbers<[1], [0], [0], [1], [0, 0, 1, 1], [], []>} : vector<16x128xbf16>, vector<128x256xbf16>, vector<16x256xf32> -> vector<16x256xf32>
    %c0_12 = arith.constant 0 : index
    %c0_13 = arith.constant 0 : index
    %13 = vector.load %arg6[%c0_12, %c0_13] : memref<1x256xf32, #tpu.memory_space<vmem>>, vector<1x256xf32>
    %14 = vector.broadcast %13 : vector<1x256xf32> to vector<16x256xf32>
    %15 = arith.addf %12, %14 : vector<16x256xf32>
    %cst_14 = arith.constant 0.176776692 : f32
    %16 = vector.broadcast %cst_14 : f32 to vector<8x128xf32>
    %17 = arith.mulf %10, %16 : vector<8x128xf32>
    %18 = vector.extract_strided_slice %15 {offsets = [0, 0], sizes = [16, 128], strides = [1, 1]} : vector<16x256xf32> to vector<16x128xf32>
    %19 = vector.extract_strided_slice %15 {offsets = [0, 128], sizes = [16, 128], strides = [1, 1]} : vector<16x256xf32> to vector<16x128xf32>
    %20 = vector.extract_strided_slice %17 {offsets = [0, 0], sizes = [8, 32], strides = [1, 1]} : vector<8x128xf32> to vector<8x32xf32>
    %21 = arith.truncf %20 : vector<8x32xf32> to vector<8x32xbf16>
    %22 = vector.extract_strided_slice %18 {offsets = [0, 0], sizes = [16, 32], strides = [1, 1]} : vector<16x128xf32> to vector<16x32xf32>
    %23 = arith.truncf %22 : vector<16x32xf32> to vector<16x32xbf16>
    %24 = vector.extract_strided_slice %19 {offsets = [0, 0], sizes = [16, 32], strides = [1, 1]} : vector<16x128xf32> to vector<16x32xf32>
    %25 = arith.truncf %24 : vector<16x32xf32> to vector<16x32xbf16>
    %cst_15 = arith.constant dense<0.000000e+00> : vector<8x16xf32>
    %26 = tpu.matmul %21, %23, %cst_15 {dimension_numbers = #tpu.dot_dimension_numbers<[1], [1], [0], [0], [0, 0, 1, 0], [], []>} : vector<8x32xbf16>, vector<16x32xbf16>, vector<8x16xf32> -> vector<8x16xf32>
    %cst_16 = arith.constant dense<0xFF800000> : vector<8xf32>
    %27 = vector.multi_reduction <maximumf>, %26, %cst_16 [1] : vector<8x16xf32> to vector<8xf32>
    %28 = vector.shape_cast %27 : vector<8xf32> to vector<8x1xf32>
    %29 = vector.broadcast %28 : vector<8x1xf32> to vector<8x16xf32>
    %30 = arith.subf %26, %29 : vector<8x16xf32>
    %31 = math.exp %30 : vector<8x16xf32>
    %cst_17 = arith.constant dense<0.000000e+00> : vector<8xf32>
    %32 = vector.multi_reduction <add>, %31, %cst_17 [1] : vector<8x16xf32> to vector<8xf32>
    %33 = vector.shape_cast %32 : vector<8xf32> to vector<8x1xf32>
    %34 = tpu.reciprocal %33 {approx = true} : vector<8x1xf32> -> vector<8x1xf32>
    %35 = vector.broadcast %34 : vector<8x1xf32> to vector<8x16xf32>
    %36 = arith.mulf %31, %35 : vector<8x16xf32>
    %37 = arith.truncf %36 : vector<8x16xf32> to vector<8x16xbf16>
    %cst_18 = arith.constant dense<0.000000e+00> : vector<8x32xf32>
    %38 = tpu.matmul %37, %25, %cst_18 {dimension_numbers = #tpu.dot_dimension_numbers<[1], [0], [0], [1], [0, 0, 1, 1], [], []>} : vector<8x16xbf16>, vector<16x32xbf16>, vector<8x32xf32> -> vector<8x32xf32>
    %39 = vector.extract_strided_slice %17 {offsets = [0, 32], sizes = [8, 32], strides = [1, 1]} : vector<8x128xf32> to vector<8x32xf32>
    %40 = arith.truncf %39 : vector<8x32xf32> to vector<8x32xbf16>
    %41 = vector.extract_strided_slice %18 {offsets = [0, 32], sizes = [16, 32], strides = [1, 1]} : vector<16x128xf32> to vector<16x32xf32>
    %42 = arith.truncf %41 : vector<16x32xf32> to vector<16x32xbf16>
    %43 = vector.extract_strided_slice %19 {offsets = [0, 32], sizes = [16, 32], strides = [1, 1]} : vector<16x128xf32> to vector<16x32xf32>
    %44 = arith.truncf %43 : vector<16x32xf32> to vector<16x32xbf16>
    %cst_19 = arith.constant dense<0.000000e+00> : vector<8x16xf32>
    %45 = tpu.matmul %40, %42, %cst_19 {dimension_numbers = #tpu.dot_dimension_numbers<[1], [1], [0], [0], [0, 0, 1, 0], [], []>} : vector<8x32xbf16>, vector<16x32xbf16>, vector<8x16xf32> -> vector<8x16xf32>
    %cst_20 = arith.constant dense<0xFF800000> : vector<8xf32>
    %46 = vector.multi_reduction <maximumf>, %45, %cst_20 [1] : vector<8x16xf32> to vector<8xf32>
    %47 = vector.shape_cast %46 : vector<8xf32> to vector<8x1xf32>
    %48 = vector.broadcast %47 : vector<8x1xf32> to vector<8x16xf32>
    %49 = arith.subf %45, %48 : vector<8x16xf32>
    %50 = math.exp %49 : vector<8x16xf32>
    %cst_21 = arith.constant dense<0.000000e+00> : vector<8xf32>
    %51 = vector.multi_reduction <add>, %50, %cst_21 [1] : vector<8x16xf32> to vector<8xf32>
    %52 = vector.shape_cast %51 : vector<8xf32> to vector<8x1xf32>
    %53 = tpu.reciprocal %52 {approx = true} : vector<8x1xf32> -> vector<8x1xf32>
    %54 = vector.broadcast %53 : vector<8x1xf32> to vector<8x16xf32>
    %55 = arith.mulf %50, %54 : vector<8x16xf32>
    %56 = arith.truncf %55 : vector<8x16xf32> to vector<8x16xbf16>
    %cst_22 = arith.constant dense<0.000000e+00> : vector<8x32xf32>
    %57 = tpu.matmul %56, %44, %cst_22 {dimension_numbers = #tpu.dot_dimension_numbers<[1], [0], [0], [1], [0, 0, 1, 1], [], []>} : vector<8x16xbf16>, vector<16x32xbf16>, vector<8x32xf32> -> vector<8x32xf32>
    %58 = vector.extract_strided_slice %17 {offsets = [0, 64], sizes = [8, 32], strides = [1, 1]} : vector<8x128xf32> to vector<8x32xf32>
    %59 = arith.truncf %58 : vector<8x32xf32> to vector<8x32xbf16>
    %60 = vector.extract_strided_slice %18 {offsets = [0, 64], sizes = [16, 32], strides = [1, 1]} : vector<16x128xf32> to vector<16x32xf32>
    %61 = arith.truncf %60 : vector<16x32xf32> to vector<16x32xbf16>
    %62 = vector.extract_strided_slice %19 {offsets = [0, 64], sizes = [16, 32], strides = [1, 1]} : vector<16x128xf32> to vector<16x32xf32>
    %63 = arith.truncf %62 : vector<16x32xf32> to vector<16x32xbf16>
    %cst_23 = arith.constant dense<0.000000e+00> : vector<8x16xf32>
    %64 = tpu.matmul %59, %61, %cst_23 {dimension_numbers = #tpu.dot_dimension_numbers<[1], [1], [0], [0], [0, 0, 1, 0], [], []>} : vector<8x32xbf16>, vector<16x32xbf16>, vector<8x16xf32> -> vector<8x16xf32>
    %cst_24 = arith.constant dense<0xFF800000> : vector<8xf32>
    %65 = vector.multi_reduction <maximumf>, %64, %cst_24 [1] : vector<8x16xf32> to vector<8xf32>
    %66 = vector.shape_cast %65 : vector<8xf32> to vector<8x1xf32>
    %67 = vector.broadcast %66 : vector<8x1xf32> to vector<8x16xf32>
    %68 = arith.subf %64, %67 : vector<8x16xf32>
    %69 = math.exp %68 : vector<8x16xf32>
    %cst_25 = arith.constant dense<0.000000e+00> : vector<8xf32>
    %70 = vector.multi_reduction <add>, %69, %cst_25 [1] : vector<8x16xf32> to vector<8xf32>
    %71 = vector.shape_cast %70 : vector<8xf32> to vector<8x1xf32>
    %72 = tpu.reciprocal %71 {approx = true} : vector<8x1xf32> -> vector<8x1xf32>
    %73 = vector.broadcast %72 : vector<8x1xf32> to vector<8x16xf32>
    %74 = arith.mulf %69, %73 : vector<8x16xf32>
    %75 = arith.truncf %74 : vector<8x16xf32> to vector<8x16xbf16>
    %cst_26 = arith.constant dense<0.000000e+00> : vector<8x32xf32>
    %76 = tpu.matmul %75, %63, %cst_26 {dimension_numbers = #tpu.dot_dimension_numbers<[1], [0], [0], [1], [0, 0, 1, 1], [], []>} : vector<8x16xbf16>, vector<16x32xbf16>, vector<8x32xf32> -> vector<8x32xf32>
    %77 = vector.extract_strided_slice %17 {offsets = [0, 96], sizes = [8, 32], strides = [1, 1]} : vector<8x128xf32> to vector<8x32xf32>
    %78 = arith.truncf %77 : vector<8x32xf32> to vector<8x32xbf16>
    %79 = vector.extract_strided_slice %18 {offsets = [0, 96], sizes = [16, 32], strides = [1, 1]} : vector<16x128xf32> to vector<16x32xf32>
    %80 = arith.truncf %79 : vector<16x32xf32> to vector<16x32xbf16>
    %81 = vector.extract_strided_slice %19 {offsets = [0, 96], sizes = [16, 32], strides = [1, 1]} : vector<16x128xf32> to vector<16x32xf32>
    %82 = arith.truncf %81 : vector<16x32xf32> to vector<16x32xbf16>
    %cst_27 = arith.constant dense<0.000000e+00> : vector<8x16xf32>
    %83 = tpu.matmul %78, %80, %cst_27 {dimension_numbers = #tpu.dot_dimension_numbers<[1], [1], [0], [0], [0, 0, 1, 0], [], []>} : vector<8x32xbf16>, vector<16x32xbf16>, vector<8x16xf32> -> vector<8x16xf32>
    %cst_28 = arith.constant dense<0xFF800000> : vector<8xf32>
    %84 = vector.multi_reduction <maximumf>, %83, %cst_28 [1] : vector<8x16xf32> to vector<8xf32>
    %85 = vector.shape_cast %84 : vector<8xf32> to vector<8x1xf32>
    %86 = vector.broadcast %85 : vector<8x1xf32> to vector<8x16xf32>
    %87 = arith.subf %83, %86 : vector<8x16xf32>
    %88 = math.exp %87 : vector<8x16xf32>
    %cst_29 = arith.constant dense<0.000000e+00> : vector<8xf32>
    %89 = vector.multi_reduction <add>, %88, %cst_29 [1] : vector<8x16xf32> to vector<8xf32>
    %90 = vector.shape_cast %89 : vector<8xf32> to vector<8x1xf32>
    %91 = tpu.reciprocal %90 {approx = true} : vector<8x1xf32> -> vector<8x1xf32>
    %92 = vector.broadcast %91 : vector<8x1xf32> to vector<8x16xf32>
    %93 = arith.mulf %88, %92 : vector<8x16xf32>
    %94 = arith.truncf %93 : vector<8x16xf32> to vector<8x16xbf16>
    %cst_30 = arith.constant dense<0.000000e+00> : vector<8x32xf32>
    %95 = tpu.matmul %94, %82, %cst_30 {dimension_numbers = #tpu.dot_dimension_numbers<[1], [0], [0], [1], [0, 0, 1, 1], [], []>} : vector<8x16xbf16>, vector<16x32xbf16>, vector<8x32xf32> -> vector<8x32xf32>
    %96 = tpu.concatenate %38, %57, %76, %95 in 1 : vector<8x32xf32>, vector<8x32xf32>, vector<8x32xf32>, vector<8x32xf32> -> vector<8x128xf32>
    %c0_31 = arith.constant 0 : index
    %c0_32 = arith.constant 0 : index
    %c0_33 = arith.constant 0 : index
    %97 = vector.load %arg7[%c0_31, %c0_32, %c0_33] : memref<1x8x128xf32, #tpu.memory_space<vmem>>, vector<1x8x128xf32>
    %98 = vector.shape_cast %97 : vector<1x8x128xf32> to vector<8x128xf32>
    %99 = vector.shape_cast %96 : vector<8x128xf32> to vector<1x8x128xf32>
    tpu.vector_store %arg7[%c0_31, %c0_32, %c0_33], %99 {strides = array<i32>} : memref<1x8x128xf32, #tpu.memory_space<vmem>>, vector<1x8x128xf32>,
    return
  }
  func.func @transform_0(%arg0: i32) -> (i32, i32, i32) {
    %c0_i32 = arith.constant 0 : i32
    %c0_i32_0 = arith.constant 0 : i32
    %c0_i32_1 = arith.constant 0 : i32
    return %arg0, %c0_i32, %c0_i32_0 : i32, i32, i32
  }
  func.func @transform_1(%arg0: i32) -> (i32, i32, i32) {
    %c0_i32 = arith.constant 0 : i32
    %c0_i32_0 = arith.constant 0 : i32
    %c0_i32_1 = arith.constant 0 : i32
    return %arg0, %c0_i32, %c0_i32_0 : i32, i32, i32
  }
  func.func @transform_2(%arg0: i32) -> (i32, i32) {
    %c0_i32 = arith.constant 0 : i32
    %c0_i32_0 = arith.constant 0 : i32
    %c0_i32_1 = arith.constant 0 : i32
    return %c0_i32, %c0_i32_0 : i32, i32
  }
  func.func @transform_3(%arg0: i32) -> (i32, i32) {
    %c0_i32 = arith.constant 0 : i32
    %c0_i32_0 = arith.constant 0 : i32
    %c0_i32_1 = arith.constant 0 : i32
    return %c0_i32, %c0_i32_0 : i32, i32
  }
  func.func @transform_4(%arg0: i32) -> (i32, i32) {
    %c0_i32 = arith.constant 0 : i32
    %c0_i32_0 = arith.constant 0 : i32
    %c0_i32_1 = arith.constant 0 : i32
    return %c0_i32, %c0_i32_0 : i32, i32
  }
  func.func @transform_5(%arg0: i32) -> (i32, i32) {
    %c0_i32 = arith.constant 0 : i32
    %c0_i32_0 = arith.constant 0 : i32
    %c0_i32_1 = arith.constant 0 : i32
    return %c0_i32, %c0_i32_0 : i32, i32
  }
  func.func @transform_6(%arg0: i32) -> (i32, i32, i32) {
    %c0_i32 = arith.constant 0 : i32
    %c0_i32_0 = arith.constant 0 : i32
    %c0_i32_1 = arith.constant 0 : i32
    return %arg0, %c0_i32, %c0_i32_0 : i32, i32, i32
  }
}

</mosaic_0001>

<llo_original>
// kernel: fused_cross_attention.1
$region0: #{fused_cross_attention.1}
  #allocation0 [shape = 'u32[]', space=smem, size = 0x4, offset = 0x4, fixed_abs, tag = 'smem constant byte address 0x4 - core index']
  #allocation1 [shape = 'u32[144,128]{1,0:T(1,128)}', space=vmem, size = 0x12000, scoped, tag = 'internal scratch']
  %s0 = inlined_call_operand.hbm [shape: f32[2,8,128], index: 0, kind: input, shape index: {}]
  %s1 = inlined_call_operand.hbm [shape: f32[2,16,128], index: 1, kind: input, shape index: {}]
  %s2 = inlined_call_operand.hbm [shape: bf16[128,128], index: 2, kind: input, shape index: {}]
  %s3 = inlined_call_operand.hbm [shape: f32[1,128], index: 3, kind: input, shape index: {}]
  %s4 = inlined_call_operand.hbm [shape: bf16[128,256], index: 4, kind: input, shape index: {}]
  %s5 = inlined_call_operand.hbm [shape: f32[1,256], index: 5, kind: input, shape index: {}]
  %s6 = inlined_call_operand.hbm [shape: f32[2,8,128], index: 6, kind: output, shape index: {}]
  %s7 = sld [smem:[#allocation0]]
  $region81: #{fused_cross_attention.1} parent=0
    _
  %s9 = ssub.s32 1, %s7
  %s10 = scalar_select 0, %s9, %s7
  $region1: #{fused_cross_attention.1} parent=0
    #allocation2 [shape = 'u8[8192]{0}', space=vmem, size = 0x2000, scoped, tag = 'input window, operand 0']
    #allocation3 [shape = 's32[2]{0}', space=sflag, size = 0x8, scoped, tag = 'scoped memory for fused_cross_attention.1']
    #allocation4 [shape = 's32[2]{0}', space=sflag, size = 0x8, scoped, tag = 'scoped memory for fused_cross_attention.1']
    #allocation5 [shape = 'u8[16384]{0}', space=vmem, size = 0x4000, scoped, tag = 'input window, operand 1']
    #allocation6 [shape = 's32[2]{0}', space=sflag, size = 0x8, scoped, tag = 'scoped memory for fused_cross_attention.1']
    #allocation7 [shape = 'u8[32768]{0}', space=vmem, size = 0x8000, scoped, tag = 'input window, operand 2, single buffered']
    #allocation8 [shape = 'u8[512]{0}', space=vmem, size = 0x400, scoped, tag = 'input window, operand 3, single buffered']
    #allocation9 [shape = 's32[1]{0}', space=sflag, size = 0x4, scoped, tag = 'scoped memory for fused_cross_attention.1']
    #allocation10 [shape = 'u8[65536]{0}', space=vmem, size = 0x10000, scoped, tag = 'input window, operand 4, single buffered']
    #allocation11 [shape = 'u8[1024]{0}', space=vmem, size = 0x400, scoped, tag = 'input window, operand 5, single buffered']
    #allocation12 [shape = 's32[1]{0}', space=sflag, size = 0x4, scoped, tag = 'scoped memory for fused_cross_attention.1']
    #allocation13 [shape = 'u8[8192]{0}', space=vmem, size = 0x2000, scoped, tag = 'output window, operand 0']
    %11 = vsyncpa [#allocation3], 0
    %s12 = scalar_lea.sflag [#allocation3], 1
    %13 = vsyncpa %s12, 0
    %14 = vsyncpa [#allocation6], 0
    %s15 = scalar_lea.sflag [#allocation6], 1
    %16 = vsyncpa %s15, 0
    %17 = vsyncpa [#allocation9], 0
    %18 = vsyncpa [#allocation12], 0
    %19 = vsyncpa [#allocation4], 0
    %s20 = scalar_lea.sflag [#allocation4], 1
    %21 = vsyncpa %s20, 0
    loop: start=0, step=1, limit=4
    $region2: #{fused_cross_attention.1} parent=1 // loop_pre_header
      _
    $region3: #{fused_cross_attention.1} parent=1 // loop_header
      %s23 = sphi 0, %s27
      %p24 = scmp.ge.s32.totalorder %s23, 4
      %s33 = sphi 0, %s35
      %s36 = sphi 0, %s33
      %s37 = sphi 0, %s36
      %s53 = sphi 0, %s37
      %s59 = sphi 0, %s61
      %s62 = sphi 0, %s59
      %s63 = sphi 0, %s62
      %s79 = sphi 0, %s63
      %s83 = sphi 0, %s83
      %s85 = sphi 0, %s83
      %s86 = sphi 0, %s85
      %s100 = sphi 0, %s86
      %s104 = sphi 0, %s104
      %s106 = sphi 0, %s104
      %s107 = sphi 0, %s106
      %s121 = sphi 0, %s107
      %s125 = sphi 0, %s125
      %s127 = sphi 0, %s125
      %s128 = sphi 0, %s127
      %s142 = sphi 0, %s128
      %s146 = sphi 0, %s146
      %s148 = sphi 0, %s146
      %s149 = sphi 0, %s148
      %s163 = sphi 0, %s149
      %s169 = sphi 0, %s171
      %s172 = sphi 0, %s169
      %s173 = sphi 0, %s172
      %s189 = sphi 0, %s173
    $region4: #{fused_cross_attention.1} parent=1 // loop_header_branch
      %26 = sbr.rel (%p24) target = $region8
    $region5: #{fused_cross_attention.1} parent=1 // loop_body
      %s28 = ssub.s32 %s23, 1
      %s29 = ssub.s32 %s23, 2
      %s30 = sadd.s32 %s23, 1
      %s31 = ssub.s32 %s23, %s30
      %p32 = scmp.eq.s32.totalorder %s31, 0
      %s34 = sadd.s32 %s33, 1
      %s35 = scalar_select %p32, %s33, %s34
      %p38 = pneg %p32
      %p39 = scmp.eq.s32.totalorder %s23, 1
      %p40 = por %p38, %p39
      %p41 = scmp.ne.s32.totalorder %s33, %s36
      %p42 = scmp.eq.s32.totalorder %s23, 0
      %p43 = por %p41, %p42
      %p44 = scmp.ne.s32.totalorder %s33, %s36
      %p45 = scmp.eq.s32.totalorder %s28, 1
      %p46 = por %p44, %p45
      %p47 = scmp.ne.s32.totalorder %s36, %s37
      %p48 = scmp.eq.s32.totalorder %s28, 0
      %p49 = por %p47, %p48
      %p50 = scmp.ne.s32.totalorder %s36, %s37
      %p51 = scmp.eq.s32.totalorder %s29, 1
      %p52 = por %p50, %p51
      %p54 = scmp.ne.s32.totalorder %s37, %s53
      %p55 = scmp.eq.s32.totalorder %s29, 0
      %p56 = por %p54, %p55
      %s57 = ssub.s32 %s23, %s30
      %p58 = scmp.eq.s32.totalorder %s57, 0
      %s60 = sadd.s32 %s59, 1
      %s61 = scalar_select %p58, %s59, %s60
      %p64 = pneg %p58
      %p65 = scmp.eq.s32.totalorder %s23, 1
      %p66 = por %p64, %p65
      %p67 = scmp.ne.s32.totalorder %s59, %s62
      %p68 = scmp.eq.s32.totalorder %s23, 0
      %p69 = por %p67, %p68
      %p70 = scmp.ne.s32.totalorder %s59, %s62
      %p71 = scmp.eq.s32.totalorder %s28, 1
      %p72 = por %p70, %p71
      %p73 = scmp.ne.s32.totalorder %s62, %s63
      %p74 = scmp.eq.s32.totalorder %s28, 0
      %p75 = por %p73, %p74
      %p76 = scmp.ne.s32.totalorder %s62, %s63
      %p77 = scmp.eq.s32.totalorder %s29, 1
      %p78 = por %p76, %p77
      %p80 = scmp.ne.s32.totalorder %s63, %s79
      %p81 = scmp.eq.s32.totalorder %s29, 0
      %p82 = por %p80, %p81
      %s84 = sadd.s32 %s83, 1
      %p87 = scmp.eq.s32.totalorder %s23, 1
      %p88 = scmp.ne.s32.totalorder %s83, %s85
      %p89 = scmp.eq.s32.totalorder %s23, 0
      %p90 = por %p88, %p89
      %p91 = scmp.ne.s32.totalorder %s83, %s85
      %p92 = scmp.eq.s32.totalorder %s28, 1
      %p93 = por %p91, %p92
      %p94 = scmp.ne.s32.totalorder %s85, %s86
      %p95 = scmp.eq.s32.totalorder %s28, 0
      %p96 = por %p94, %p95
      %p97 = scmp.ne.s32.totalorder %s85, %s86
      %p98 = scmp.eq.s32.totalorder %s29, 1
      %p99 = por %p97, %p98
      %p101 = scmp.ne.s32.totalorder %s86, %s100
      %p102 = scmp.eq.s32.totalorder %s29, 0
      %p103 = por %p101, %p102
      %s105 = sadd.s32 %s104, 1
      %p108 = scmp.eq.s32.totalorder %s23, 1
      %p109 = scmp.ne.s32.totalorder %s104, %s106
      %p110 = scmp.eq.s32.totalorder %s23, 0
      %p111 = por %p109, %p110
      %p112 = scmp.ne.s32.totalorder %s104, %s106
      %p113 = scmp.eq.s32.totalorder %s28, 1
      %p114 = por %p112, %p113
      %p115 = scmp.ne.s32.totalorder %s106, %s107
      %p116 = scmp.eq.s32.totalorder %s28, 0
      %p117 = por %p115, %p116
      %p118 = scmp.ne.s32.totalorder %s106, %s107
      %p119 = scmp.eq.s32.totalorder %s29, 1
      %p120 = por %p118, %p119
      %p122 = scmp.ne.s32.totalorder %s107, %s121
      %p123 = scmp.eq.s32.totalorder %s29, 0
      %p124 = por %p122, %p123
      %s126 = sadd.s32 %s125, 1
      %p129 = scmp.eq.s32.totalorder %s23, 1
      %p130 = scmp.ne.s32.totalorder %s125, %s127
      %p131 = scmp.eq.s32.totalorder %s23, 0
      %p132 = por %p130, %p131
      %p133 = scmp.ne.s32.totalorder %s125, %s127
      %p134 = scmp.eq.s32.totalorder %s28, 1
      %p135 = por %p133, %p134
      %p136 = scmp.ne.s32.totalorder %s127, %s128
      %p137 = scmp.eq.s32.totalorder %s28, 0
      %p138 = por %p136, %p137
      %p139 = scmp.ne.s32.totalorder %s127, %s128
      %p140 = scmp.eq.s32.totalorder %s29, 1
      %p141 = por %p139, %p140
      %p143 = scmp.ne.s32.totalorder %s128, %s142
      %p144 = scmp.eq.s32.totalorder %s29, 0
      %p145 = por %p143, %p144
      %s147 = sadd.s32 %s146, 1
      %p150 = scmp.eq.s32.totalorder %s23, 1
      %p151 = scmp.ne.s32.totalorder %s146, %s148
      %p152 = scmp.eq.s32.totalorder %s23, 0
      %p153 = por %p151, %p152
      %p154 = scmp.ne.s32.totalorder %s146, %s148
      %p155 = scmp.eq.s32.totalorder %s28, 1
      %p156 = por %p154, %p155
      %p157 = scmp.ne.s32.totalorder %s148, %s149
      %p158 = scmp.eq.s32.totalorder %s28, 0
      %p159 = por %p157, %p158
      %p160 = scmp.ne.s32.totalorder %s148, %s149
      %p161 = scmp.eq.s32.totalorder %s29, 1
      %p162 = por %p160, %p161
      %p164 = scmp.ne.s32.totalorder %s149, %s163
      %p165 = scmp.eq.s32.totalorder %s29, 0
      %p166 = por %p164, %p165
      %s167 = ssub.s32 %s23, %s30
      %p168 = scmp.eq.s32.totalorder %s167, 0
      %s170 = sadd.s32 %s169, 1
      %s171 = scalar_select %p168, %s169, %s170
      %p174 = pneg %p168
      %p175 = scmp.eq.s32.totalorder %s23, 1
      %p176 = por %p174, %p175
      %p177 = scmp.ne.s32.totalorder %s169, %s172
      %p178 = scmp.eq.s32.totalorder %s23, 0
      %p179 = por %p177, %p178
      %p180 = scmp.ne.s32.totalorder %s169, %s172
      %p181 = scmp.eq.s32.totalorder %s28, 1
      %p182 = por %p180, %p181
      %p183 = scmp.ne.s32.totalorder %s172, %s173
      %p184 = scmp.eq.s32.totalorder %s28, 0
      %p185 = por %p183, %p184
      %p186 = scmp.ne.s32.totalorder %s172, %s173
      %p187 = scmp.eq.s32.totalorder %s29, 1
      %p188 = por %p186, %p187
      %p190 = scmp.ne.s32.totalorder %s173, %s189
      %p191 = scmp.eq.s32.totalorder %s29, 0
      %p192 = por %p190, %p191
      %p193 = scmp.le.s32.totalorder 1, %s23
      %p194 = scmp.lt.s32.totalorder %s23, 3
      %p195 = pnand %p193, %p194
      %p196 = pneg %p195
      // Predicated region
      $region9: #{fused_cross_attention.1} parent=5 // pred_check
        _
      $region10: #{fused_cross_attention.1} parent=5 // pred_check_branch
        %198 = sbr.rel (%p195) target = $region12
      $region11: #{fused_cross_attention.1} parent=5 // pred_region
        %s199 = ssub.s32 %s23, 1
        // Predicated region
        $region13: #{fused_cross_attention.1} parent=11 // pred_check
          %p200 = pneg %p96
        $region14: #{fused_cross_attention.1} parent=11 // pred_check_branch
          %202 = sbr.rel (%p200) target = $region16
        $region15: #{fused_cross_attention.1} parent=11 // pred_region
          %s204 = ssub.s32 1024, 1024
          %205 = vsyncadd [#allocation6], %s204
          %s206 = sshll.u32 [#allocation7], 4
          %s207 = int_to_ptr.vmem [resolvable:$true] %s206
          %212 = dma.hbm_to_vmem [thread:$0]  %s2, 1024, %s207, [#allocation6], 64, 64, 4
        $region16: #{fused_cross_attention.1} parent=11 // pred_fallthru
          _
        // Predicated region
        $region17: #{fused_cross_attention.1} parent=11 // pred_check
          %p213 = pneg %p117
        $region18: #{fused_cross_attention.1} parent=11 // pred_check_branch
          %215 = sbr.rel (%p213) target = $region20
        $region19: #{fused_cross_attention.1} parent=11 // pred_region
          %s217 = ssub.s32 16, 16
          %218 = vsyncadd [#allocation9], %s217
          %s220 = sshll.u32 [#allocation8], 4
          %s221 = int_to_ptr.vmem [resolvable:$true] %s220
          %223 = dma.hbm_to_vmem [thread:$0]  %s3, 16, %s221, [#allocation9]
        $region20: #{fused_cross_attention.1} parent=11 // pred_fallthru
          _
        // Predicated region
        $region21: #{fused_cross_attention.1} parent=11 // pred_check
          %p224 = pneg %p138
        $region22: #{fused_cross_attention.1} parent=11 // pred_check_branch
          %226 = sbr.rel (%p224) target = $region24
        $region23: #{fused_cross_attention.1} parent=11 // pred_region
          %s228 = ssub.s32 2048, 2048
          %229 = vsyncadd [#allocation9], %s228
          %s230 = sshll.u32 [#allocation10], 4
          %s231 = int_to_ptr.vmem [resolvable:$true] %s230
          %236 = dma.hbm_to_vmem [thread:$0]  %s4, 2048, %s231, [#allocation9], 128, 128, 8
        $region24: #{fused_cross_attention.1} parent=11 // pred_fallthru
          _
        // Predicated region
        $region25: #{fused_cross_attention.1} parent=11 // pred_check
          %p237 = pneg %p159
        $region26: #{fused_cross_attention.1} parent=11 // pred_check_branch
          %239 = sbr.rel (%p237) target = $region28
        $region27: #{fused_cross_attention.1} parent=11 // pred_region
          %s241 = ssub.s32 32, 32
          %242 = vsyncadd [#allocation12], %s241
          %s244 = sshll.u32 [#allocation11], 4
          %s245 = int_to_ptr.vmem [resolvable:$true] %s244
          %247 = dma.hbm_to_vmem [thread:$0]  %s5, 32, %s245, [#allocation12]
        $region28: #{fused_cross_attention.1} parent=11 // pred_fallthru
          _
      $region12: #{fused_cross_attention.1} parent=5 // pred_fallthru
        _
      %p248 = scmp.lt.s32.totalorder %s23, 2
      // Predicated region
      $region29: #{fused_cross_attention.1} parent=5 // pred_check
        %p249 = pneg %p248
      $region30: #{fused_cross_attention.1} parent=5 // pred_check_branch
        %251 = sbr.rel (%p249) target = $region32
      $region31: #{fused_cross_attention.1} parent=5 // pred_region
        // Predicated region
        $region33: #{fused_cross_attention.1} parent=31 // pred_check
          %p252 = pneg %p43
        $region34: #{fused_cross_attention.1} parent=31 // pred_check_branch
          %254 = sbr.rel (%p252) target = $region36
        $region35: #{fused_cross_attention.1} parent=31 // pred_region
          %s255 = sand.u32 %s33, 1
          %s256 = scalar_lea.sflag [#allocation3], %s255
          %s257 = sand.u32 %s33, 1
          %s258 = smul.addr %s257, 8
          %s259 = scalar_lea.vmem [#allocation2], %s258
          %s261 = ssub.s32 128, 128
          %262 = vsyncadd %s256, %s261
          %s263 = smul.addr %s23, 128
          %s264 = scalar_lea.hbm %s0, %s263
          %s266 = sshll.u32 %s259, 4
          %s267 = int_to_ptr.vmem [resolvable:$true] %s266
          %269 = dma.hbm_to_vmem [thread:$0]  %s264, 128, %s267, %s256
        $region36: #{fused_cross_attention.1} parent=31 // pred_fallthru
          _
        // Predicated region
        $region37: #{fused_cross_attention.1} parent=31 // pred_check
          %p270 = pneg %p69
        $region38: #{fused_cross_attention.1} parent=31 // pred_check_branch
          %272 = sbr.rel (%p270) target = $region40
        $region39: #{fused_cross_attention.1} parent=31 // pred_region
          %s273 = sand.u32 %s23, 1
          %s274 = scalar_lea.sflag [#allocation6], %s273
          %s275 = sand.u32 %s59, 1
          %s276 = smul.addr %s275, 16
          %s277 = scalar_lea.vmem [#allocation5], %s276
          %s279 = ssub.s32 256, 256
          %280 = vsyncadd %s274, %s279
          %s281 = smul.addr %s23, 2
          %s282 = smul.addr %s281, 128
          %s283 = scalar_lea.hbm %s1, %s282
          %s284 = sshll.u32 %s277, 4
          %s285 = int_to_ptr.vmem [resolvable:$true] %s284
          %290 = dma.hbm_to_vmem [thread:$0]  %s283, 256, %s285, %s274, 128, 128, 8
        $region40: #{fused_cross_attention.1} parent=31 // pred_fallthru
          _
      $region32: #{fused_cross_attention.1} parent=5 // pred_fallthru
        _
      %p291 = scmp.le.s32.totalorder 1, %s23
      %p292 = scmp.lt.s32.totalorder %s23, 3
      %p293 = pnand %p291, %p292
      %p294 = pneg %p293
      // Predicated region
      $region41: #{fused_cross_attention.1} parent=5 // pred_check
        _
      $region42: #{fused_cross_attention.1} parent=5 // pred_check_branch
        %296 = sbr.rel (%p293) target = $region44
      $region43: #{fused_cross_attention.1} parent=5 // pred_region
        %s297 = ssub.s32 %s23, 1
        %s298 = sand.u32 %s36, 1
        %s299 = scalar_lea.sflag [#allocation3], %s298
        %s300 = sand.u32 %s36, 1
        %s301 = smul.addr %s300, 8
        %s302 = scalar_lea.vmem [#allocation2], %s301
        // Predicated region
        $region45: #{fused_cross_attention.1} parent=43 // pred_check
          %p303 = pneg %p49
        $region46: #{fused_cross_attention.1} parent=43 // pred_check_branch
          %305 = sbr.rel (%p303) target = $region48
        $region47: #{fused_cross_attention.1} parent=43 // pred_region
          %306 = dma.done %s299, 128
        $region48: #{fused_cross_attention.1} parent=43 // pred_fallthru
          _
        %s307 = sand.u32 %s28, 1
        %s308 = scalar_lea.sflag [#allocation6], %s307
        %s309 = sand.u32 %s62, 1
        %s310 = smul.addr %s309, 16
        %s311 = scalar_lea.vmem [#allocation5], %s310
        // Predicated region
        $region49: #{fused_cross_attention.1} parent=43 // pred_check
          %p312 = pneg %p75
        $region50: #{fused_cross_attention.1} parent=43 // pred_check_branch
          %314 = sbr.rel (%p312) target = $region52
        $region51: #{fused_cross_attention.1} parent=43 // pred_region
          %315 = dma.done %s308, 256
        $region52: #{fused_cross_attention.1} parent=43 // pred_fallthru
          _
        // Predicated region
        $region53: #{fused_cross_attention.1} parent=43 // pred_check
          %p316 = pneg %p96
        $region54: #{fused_cross_attention.1} parent=43 // pred_check_branch
          %318 = sbr.rel (%p316) target = $region56
        $region55: #{fused_cross_attention.1} parent=43 // pred_region
          %319 = dma.done [#allocation6], 1024
        $region56: #{fused_cross_attention.1} parent=43 // pred_fallthru
          _
        // Predicated region
        $region57: #{fused_cross_attention.1} parent=43 // pred_check
          %p320 = pneg %p117
        $region58: #{fused_cross_attention.1} parent=43 // pred_check_branch
          %322 = sbr.rel (%p320) target = $region60
        $region59: #{fused_cross_attention.1} parent=43 // pred_region
          %323 = dma.done [#allocation9], 16
        $region60: #{fused_cross_attention.1} parent=43 // pred_fallthru
          _
        // Predicated region
        $region61: #{fused_cross_attention.1} parent=43 // pred_check
          %p324 = pneg %p138
        $region62: #{fused_cross_attention.1} parent=43 // pred_check_branch
          %326 = sbr.rel (%p324) target = $region64
        $region63: #{fused_cross_attention.1} parent=43 // pred_region
          %327 = dma.done [#allocation9], 2048
        $region64: #{fused_cross_attention.1} parent=43 // pred_fallthru
          _
        // Predicated region
        $region65: #{fused_cross_attention.1} parent=43 // pred_check
          %p328 = pneg %p159
        $region66: #{fused_cross_attention.1} parent=43 // pred_check_branch
          %330 = sbr.rel (%p328) target = $region68
        $region67: #{fused_cross_attention.1} parent=43 // pred_region
          %331 = dma.done [#allocation12], 32
        $region68: #{fused_cross_attention.1} parent=43 // pred_fallthru
          _
        %s332 = sand.u32 %s36, 1
        %s333 = scalar_lea.sflag [#allocation3], %s332
        %s334 = sand.u32 %s36, 1
        %s335 = smul.addr %s334, 8
        %s336 = scalar_lea.vmem [#allocation2], %s335
        %p337 = pneg %p49
        %p338 = pneg %p46
        %s339 = sand.u32 %s28, 1
        %s340 = scalar_lea.sflag [#allocation6], %s339
        %s341 = sand.u32 %s62, 1
        %s342 = smul.addr %s341, 16
        %s343 = scalar_lea.vmem [#allocation5], %s342
        %p344 = pneg %p75
        %p345 = pneg %p72
        %p346 = pneg %p96
        %p347 = pneg %p93
        %p348 = pneg %p117
        %p349 = pneg %p114
        %p350 = pneg %p138
        %p351 = pneg %p135
        %p352 = pneg %p159
        %p353 = pneg %p156
        %p354 = pneg %p185
        %p355 = pneg %p182
        %s356 = sand.u32 %s172, 1
        %s357 = scalar_lea.sflag [#allocation4], %s356
        %s358 = sand.u32 %s172, 1
        %s359 = smul.addr %s358, 8
        %s360 = scalar_lea.vmem [#allocation13], %s359
        %v362 = vld [vmem:[%s302] sm:$0xff]
        %v363 = vpack.c.bf16 %v362, %v362
        %v364 = vld [vmem:[%s311] sm:$0xff]
        %v365 = vld [vmem:[%s311 + $0x8] sm:$0xff]
        %v366 = vpack.c.bf16 %v365, %v364
        %v367 = vld [vmem:[#allocation7] sm:$0xf]
        %v368 = vld [vmem:[#allocation7 + $0x4] sm:$0xf]
        %v369 = vld [vmem:[#allocation7 + $0x8] sm:$0xf]
        %v370 = vld [vmem:[#allocation7 + $0xc] sm:$0xf]
        %v371 = vld [vmem:[#allocation7 + $0x10] sm:$0xf]
        %v372 = vld [vmem:[#allocation7 + $0x14] sm:$0xf]
        %v373 = vld [vmem:[#allocation7 + $0x18] sm:$0xf]
        %v374 = vld [vmem:[#allocation7 + $0x1c] sm:$0xf]
        %v375 = vld [vmem:[#allocation7 + $0x20] sm:$0xf]
        %v376 = vld [vmem:[#allocation7 + $0x24] sm:$0xf]
        %v377 = vld [vmem:[#allocation7 + $0x28] sm:$0xf]
        %v378 = vld [vmem:[#allocation7 + $0x2c] sm:$0xf]
        %v379 = vld [vmem:[#allocation7 + $0x30] sm:$0xf]
        %v380 = vld [vmem:[#allocation7 + $0x34] sm:$0xf]
        %v381 = vld [vmem:[#allocation7 + $0x38] sm:$0xf]
        %v382 = vld [vmem:[#allocation7 + $0x3c] sm:$0xf]
        %v383 = vld [vmem:[#allocation8] sm:$0x1]
        %v385 = vlaneseq
        %v386 = vshrl.u32 %v385, 7
        %v387 = vsub.s32 0, %v386
        %v388 = vrot.slane %v383, %v387
        %v406 = vunpack.c.l.b16 %v367
        %v407 = vunpack.c.l.b16 %v368
        %v408 = vunpack.c.l.b16 %v369
        %v409 = vunpack.c.l.b16 %v370
        %v410 = vunpack.c.l.b16 %v371
        %v411 = vunpack.c.l.b16 %v372
        %v412 = vunpack.c.l.b16 %v373
        %v413 = vunpack.c.l.b16 %v374
        %v414 = vunpack.c.l.b16 %v375
        %v415 = vunpack.c.l.b16 %v376
        %v416 = vunpack.c.l.b16 %v377
        %v417 = vunpack.c.l.b16 %v378
        %v418 = vunpack.c.l.b16 %v379
        %v419 = vunpack.c.l.b16 %v380
        %v420 = vunpack.c.l.b16 %v381
        %v421 = vunpack.c.l.b16 %v382
        %v422 = vpack.c.b16 %v407, %v406
        %v423 = vpack.c.b16 %v409, %v408
        %v424 = vpack.c.b16 %v411, %v410
        %v425 = vpack.c.b16 %v413, %v412
        %v426 = vpack.c.b16 %v415, %v414
        %v427 = vpack.c.b16 %v417, %v416
        %v428 = vpack.c.b16 %v419, %v418
        %v429 = vpack.c.b16 %v421, %v420
        %438 = vmatprep.subr.bf16.mxu0 0
        %439 = vmatpush1.bf16.msra.mxu0 %v422
        %440 = vmatprep.subr.bf16.mxu0 0
        %441 = vmatpush1.bf16.msra.mxu0 %v423
        %442 = vmatprep.subr.bf16.mxu0 0
        %443 = vmatpush1.bf16.msra.mxu0 %v424
        %444 = vmatprep.subr.bf16.mxu0 0
        %445 = vmatpush1.bf16.msra.mxu0 %v425
        %446 = vmatprep.subr.bf16.mxu0 0
        %447 = vmatpush1.bf16.msra.mxu0 %v426
        %448 = vmatprep.subr.bf16.mxu0 0
        %449 = vmatpush1.bf16.msra.mxu0 %v427
        %450 = vmatprep.subr.bf16.mxu0 0
        %451 = vmatpush1.bf16.msra.mxu0 %v428
        %452 = vmatprep.subr.bf16.mxu0 0
        %453 = vmatpush1.bf16.msra.mxu0 %v429
        %454 = vmatprep.subr.bf16.mxu0 0
        %455 = vmatpush1.bf16.msra.mxu0 0
        %456 = vmatprep.subr.bf16.mxu0 0
        %457 = vmatpush1.bf16.msra.mxu0 0
        %458 = vmatprep.subr.bf16.mxu0 0
        %459 = vmatpush1.bf16.msra.mxu0 0
        %460 = vmatprep.subr.bf16.mxu0 0
        %461 = vmatpush1.bf16.msra.mxu0 0
        %462 = vmatprep.subr.bf16.mxu0 0
        %463 = vmatpush1.bf16.msra.mxu0 0
        %464 = vmatprep.subr.bf16.mxu0 0
        %465 = vmatpush1.bf16.msra.mxu0 0
        %466 = vmatprep.subr.bf16.mxu0 0
        %467 = vmatpush1.bf16.msra.mxu0 0
        %468 = vmatprep.subr.bf16.mxu0 0
        %469 = vmatpush1.bf16.msra.mxu0 0
        %470 = vmatprep.mubr.bf16.mxu0 0
        %471 = vmatmul.mubr.bf16.gmra.mrb[0].mxu0 %v363
        %v472 = vpop.f32.mrb[0].mxu0
        %v473 = vadd.f32 %v388, %v472
        %v474 = vpop.f32.mrb[0].mxu0
        %v475 = vpop.f32.mrb[0].mxu0
        %v476 = vpop.f32.mrb[0].mxu0
        %477 = vdwg.mxu0
        %v478 = vld [vmem:[#allocation10] sm:$0xff]
        %v479 = vld [vmem:[#allocation10 + $0x8] sm:$0xff]
        %v480 = vld [vmem:[#allocation10 + $0x10] sm:$0xff]
        %v481 = vld [vmem:[#allocation10 + $0x18] sm:$0xff]
        %v482 = vld [vmem:[#allocation10 + $0x20] sm:$0xff]
        %v483 = vld [vmem:[#allocation10 + $0x28] sm:$0xff]
        %v484 = vld [vmem:[#allocation10 + $0x30] sm:$0xff]
        %v485 = vld [vmem:[#allocation10 + $0x38] sm:$0xff]
        %v486 = vld [vmem:[#allocation10 + $0x40] sm:$0xff]
        %v487 = vld [vmem:[#allocation10 + $0x48] sm:$0xff]
        %v488 = vld [vmem:[#allocation10 + $0x50] sm:$0xff]
        %v489 = vld [vmem:[#allocation10 + $0x58] sm:$0xff]
        %v490 = vld [vmem:[#allocation10 + $0x60] sm:$0xff]
        %v491 = vld [vmem:[#allocation10 + $0x68] sm:$0xff]
        %v492 = vld [vmem:[#allocation10 + $0x70] sm:$0xff]
        %v493 = vld [vmem:[#allocation10 + $0x78] sm:$0xff]
        %v494 = vld [vmem:[#allocation11] sm:$0x3]
        %v496 = vlaneseq
        %v497 = vshrl.u32 %v496, 7
        %v498 = vsub.s32 0, %v497
        %v499 = vrot.slane %v494, %v498
        %v500 = vlaneseq
        %v501 = vshrl.u32 %v500, 7
        %v502 = vsub.s32 1, %v501
        %v503 = vrot.slane %v494, %v502
        %v522 = vunpack.c.l.b16 %v478
        %v523 = vunpack.c.h.b16 %v478
        %v524 = vunpack.c.l.b16 %v479
        %v525 = vunpack.c.h.b16 %v479
        %v526 = vunpack.c.l.b16 %v480
        %v527 = vunpack.c.h.b16 %v480
        %v528 = vunpack.c.l.b16 %v481
        %v529 = vunpack.c.h.b16 %v481
        %v530 = vunpack.c.l.b16 %v482
        %v531 = vunpack.c.h.b16 %v482
        %v532 = vunpack.c.l.b16 %v483
        %v533 = vunpack.c.h.b16 %v483
        %v534 = vunpack.c.l.b16 %v484
        %v535 = vunpack.c.h.b16 %v484
        %v536 = vunpack.c.l.b16 %v485
        %v537 = vunpack.c.h.b16 %v485
        %v538 = vunpack.c.l.b16 %v486
        %v539 = vunpack.c.h.b16 %v486
        %v540 = vunpack.c.l.b16 %v487
        %v541 = vunpack.c.h.b16 %v487
        %v542 = vunpack.c.l.b16 %v488
        %v543 = vunpack.c.h.b16 %v488
        %v544 = vunpack.c.l.b16 %v489
        %v545 = vunpack.c.h.b16 %v489
        %v546 = vunpack.c.l.b16 %v490
        %v547 = vunpack.c.h.b16 %v490
        %v548 = vunpack.c.l.b16 %v491
        %v549 = vunpack.c.h.b16 %v491
        %v550 = vunpack.c.l.b16 %v492
        %v551 = vunpack.c.h.b16 %v492
        %v552 = vunpack.c.l.b16 %v493
        %v553 = vunpack.c.h.b16 %v493
        %v554 = vpack.c.b16 %v524, %v522
        %v555 = vpack.c.b16 %v525, %v523
        %v556 = vpack.c.b16 %v528, %v526
        %v557 = vpack.c.b16 %v529, %v527
        %v558 = vpack.c.b16 %v532, %v530
        %v559 = vpack.c.b16 %v533, %v531
        %v560 = vpack.c.b16 %v536, %v534
        %v561 = vpack.c.b16 %v537, %v535
        %v562 = vpack.c.b16 %v540, %v538
        %v563 = vpack.c.b16 %v541, %v539
        %v564 = vpack.c.b16 %v544, %v542
        %v565 = vpack.c.b16 %v545, %v543
        %v566 = vpack.c.b16 %v548, %v546
        %v567 = vpack.c.b16 %v549, %v547
        %v568 = vpack.c.b16 %v552, %v550
        %v569 = vpack.c.b16 %v553, %v551
        %586 = vmatprep.subr.bf16.mxu0 %v555
        %587 = vmatpush1.bf16.msra.mxu0 %v554
        %588 = vmatprep.subr.bf16.mxu0 %v557
        %589 = vmatpush1.bf16.msra.mxu0 %v556
        %590 = vmatprep.subr.bf16.mxu0 %v559
        %591 = vmatpush1.bf16.msra.mxu0 %v558
        %592 = vmatprep.subr.bf16.mxu0 %v561
        %593 = vmatpush1.bf16.msra.mxu0 %v560
        %594 = vmatprep.subr.bf16.mxu0 %v563
        %595 = vmatpush1.bf16.msra.mxu0 %v562
        %596 = vmatprep.subr.bf16.mxu0 %v565
        %597 = vmatpush1.bf16.msra.mxu0 %v564
        %598 = vmatprep.subr.bf16.mxu0 %v567
        %599 = vmatpush1.bf16.msra.mxu0 %v566
        %600 = vmatprep.subr.bf16.mxu0 %v569
        %601 = vmatpush1.bf16.msra.mxu0 %v568
        %602 = vmatprep.subr.bf16.mxu0 0
        %603 = vmatpush1.bf16.msra.mxu0 0
        %604 = vmatprep.subr.bf16.mxu0 0
        %605 = vmatpush1.bf16.msra.mxu0 0
        %606 = vmatprep.subr.bf16.mxu0 0
        %607 = vmatpush1.bf16.msra.mxu0 0
        %608 = vmatprep.subr.bf16.mxu0 0
        %609 = vmatpush1.bf16.msra.mxu0 0
        %610 = vmatprep.subr.bf16.mxu0 0
        %611 = vmatpush1.bf16.msra.mxu0 0
        %612 = vmatprep.subr.bf16.mxu0 0
        %613 = vmatpush1.bf16.msra.mxu0 0
        %614 = vmatprep.subr.bf16.mxu0 0
        %615 = vmatpush1.bf16.msra.mxu0 0
        %616 = vmatprep.subr.bf16.mxu0 0
        %617 = vmatpush1.bf16.msra.mxu0 0
        %618 = vmatprep.mubr.bf16.mxu0 0
        %619 = vmatmul.mubr.bf16.gmra.mrb[0].mxu0 %v366
        %v620 = vpop.f32.mrb[0].mxu0
        %v621 = vadd.f32 %v499, %v620
        %v622 = vpop.f32.mrb[0].mxu0
        %v623 = vadd.f32 %v503, %v622
        %v624 = vpop.f32.mrb[0].mxu0
        %v625 = vadd.f32 %v499, %v624
        %v626 = vpop.f32.mrb[0].mxu0
        %v627 = vadd.f32 %v503, %v626
        %628 = vdwg.mxu0
        %v629 = vmul.f32 %v473, 0.17677669
        %v630 = vpack.c.bf16 %v629, %v629
        %v631 = vpack.c.bf16 %v625, %v621
        %v632 = vpack.c.bf16 %v627, %v623
        %vm633 = vcmask 261120
        %v635 = vsel %vm633, %v630, 0
        %v638 = vsel %vm633, %v631, 0
        %640 = vmatprep.subr.bf16.mxu0 0
        %641 = vmatpush1.bf16.xpose.msra.mxu0 %v638
        %642 = vmatprep.subr.bf16.mxu0 0
        %643 = vmatpush1.bf16.xpose.msra.mxu0 0
        %644 = vmatprep.subr.bf16.mxu0 0
        %645 = vmatpush1.bf16.xpose.msra.mxu0 0
        %646 = vmatprep.subr.bf16.mxu0 0
        %647 = vmatpush1.bf16.xpose.msra.mxu0 0
        %648 = vmatprep.subr.bf16.mxu0 0
        %649 = vmatpush1.bf16.xpose.msra.mxu0 0
        %650 = vmatprep.subr.bf16.mxu0 0
        %651 = vmatpush1.bf16.xpose.msra.mxu0 0
        %652 = vmatprep.subr.bf16.mxu0 0
        %653 = vmatpush1.bf16.xpose.msra.mxu0 0
        %654 = vmatprep.subr.bf16.mxu0 0
        %655 = vmatpush1.bf16.xpose.msra.mxu0 0
        %656 = vmatprep.subr.bf16.mxu0 0
        %657 = vmatpush1.bf16.xpose.msra.mxu0 0
        %658 = vmatprep.subr.bf16.mxu0 0
        %659 = vmatpush1.bf16.xpose.msra.mxu0 0
        %660 = vmatprep.subr.bf16.mxu0 0
        %661 = vmatpush1.bf16.xpose.msra.mxu0 0
        %662 = vmatprep.subr.bf16.mxu0 0
        %663 = vmatpush1.bf16.xpose.msra.mxu0 0
        %664 = vmatprep.subr.bf16.mxu0 0
        %665 = vmatpush1.bf16.xpose.msra.mxu0 0
        %666 = vmatprep.subr.bf16.mxu0 0
        %667 = vmatpush1.bf16.xpose.msra.mxu0 0
        %668 = vmatprep.subr.bf16.mxu0 0
        %669 = vmatpush1.bf16.xpose.msra.mxu0 0
        %670 = vmatprep.subr.bf16.mxu0 0
        %671 = vmatpush1.bf16.xpose.msra.mxu0 0
        %672 = vmatprep.mubr.bf16.mxu0 0
        %673 = vmatmul.mubr.bf16.gmra.mrb[0].mxu0 %v635
        %v674 = vpop.f32.mrb[0].mxu0
        %v675 = vadd.f32 0.0, %v674
        %v676 = vpop.f32.mrb[0].mxu0
        %v677 = vpop.f32.mrb[0].mxu0
        %v678 = vpop.f32.mrb[0].mxu0
        %679 = vdwg.mxu0
        %vm680 = vcmask 130048
        %v681 = vsel %vm680, %v675, -inf
        %682 = vmax.xlane.f32.xlu0 %v681
        %v683 = vpop.xlane.xlu0 %682
        %v684 = vsub.f32 %v675, %v683
        %v685 = vmul.f32 %v684, 1.442695
        %v686 = vpow.pop %v685
        %v687 = vsel %vm680, %v686, 0.0
        %688 = vadd.xlane.f32.xlu0 %v687
        %v689 = vpop.xlane.xlu0 %688
        %v690 = vrcp.pop %v689
        %v691 = vmul.f32 %v686, %v690
        %v692 = vpack.c.bf16 %v691, %v691
        %v694 = vsel %vm680, %v692, 0
        %696 = vmatprep.subr.bf16.mxu0 0
        %697 = vmatpush1.bf16.msra.mxu0 %v632
        %698 = vmatprep.subr.bf16.mxu0 0
        %699 = vmatpush1.bf16.msra.mxu0 0
        %700 = vmatprep.subr.bf16.mxu0 0
        %701 = vmatpush1.bf16.msra.mxu0 0
        %702 = vmatprep.subr.bf16.mxu0 0
        %703 = vmatpush1.bf16.msra.mxu0 0
        %704 = vmatprep.subr.bf16.mxu0 0
        %705 = vmatpush1.bf16.msra.mxu0 0
        %706 = vmatprep.subr.bf16.mxu0 0
        %707 = vmatpush1.bf16.msra.mxu0 0
        %708 = vmatprep.subr.bf16.mxu0 0
        %709 = vmatpush1.bf16.msra.mxu0 0
        %710 = vmatprep.subr.bf16.mxu0 0
        %711 = vmatpush1.bf16.msra.mxu0 0
        %712 = vmatprep.subr.bf16.mxu0 0
        %713 = vmatpush1.bf16.msra.mxu0 0
        %714 = vmatprep.subr.bf16.mxu0 0
        %715 = vmatpush1.bf16.msra.mxu0 0
        %716 = vmatprep.subr.bf16.mxu0 0
        %717 = vmatpush1.bf16.msra.mxu0 0
        %718 = vmatprep.subr.bf16.mxu0 0
        %719 = vmatpush1.bf16.msra.mxu0 0
        %720 = vmatprep.subr.bf16.mxu0 0
        %721 = vmatpush1.bf16.msra.mxu0 0
        %722 = vmatprep.subr.bf16.mxu0 0
        %723 = vmatpush1.bf16.msra.mxu0 0
        %724 = vmatprep.subr.bf16.mxu0 0
        %725 = vmatpush1.bf16.msra.mxu0 0
        %726 = vmatprep.subr.bf16.mxu0 0
        %727 = vmatpush1.bf16.msra.mxu0 0
        %728 = vmatprep.mubr.bf16.mxu0 0
        %729 = vmatmul.mubr.bf16.gmra.mrb[0].mxu0 %v694
        %v730 = vpop.f32.mrb[0].mxu0
        %v731 = vadd.f32 0.0, %v730
        %v732 = vpop.f32.mrb[0].mxu0
        %v733 = vpop.f32.mrb[0].mxu0
        %v734 = vpop.f32.mrb[0].mxu0
        %735 = vdwg.mxu0
        %737 = vrot.lane.b32.xlu0 %v630, 96
        %v738 = vpop.permute.xlu0 %737
        %740 = vrot.lane.b32.xlu0 %v631, 96
        %v741 = vpop.permute.xlu0 %740
        %v743 = vsel %vm633, %v738, 0
        %v746 = vsel %vm633, %v741, 0
        %748 = vmatprep.subr.bf16.mxu0 0
        %749 = vmatpush1.bf16.xpose.msra.mxu0 %v746
        %750 = vmatprep.subr.bf16.mxu0 0
        %751 = vmatpush1.bf16.xpose.msra.mxu0 0
        %752 = vmatprep.subr.bf16.mxu0 0
        %753 = vmatpush1.bf16.xpose.msra.mxu0 0
        %754 = vmatprep.subr.bf16.mxu0 0
        %755 = vmatpush1.bf16.xpose.msra.mxu0 0
        %756 = vmatprep.subr.bf16.mxu0 0
        %757 = vmatpush1.bf16.xpose.msra.mxu0 0
        %758 = vmatprep.subr.bf16.mxu0 0
        %759 = vmatpush1.bf16.xpose.msra.mxu0 0
        %760 = vmatprep.subr.bf16.mxu0 0
        %761 = vmatpush1.bf16.xpose.msra.mxu0 0
        %762 = vmatprep.subr.bf16.mxu0 0
        %763 = vmatpush1.bf16.xpose.msra.mxu0 0
        %764 = vmatprep.subr.bf16.mxu0 0
        %765 = vmatpush1.bf16.xpose.msra.mxu0 0
        %766 = vmatprep.subr.bf16.mxu0 0
        %767 = vmatpush1.bf16.xpose.msra.mxu0 0
        %768 = vmatprep.subr.bf16.mxu0 0
        %769 = vmatpush1.bf16.xpose.msra.mxu0 0
        %770 = vmatprep.subr.bf16.mxu0 0
        %771 = vmatpush1.bf16.xpose.msra.mxu0 0
        %772 = vmatprep.subr.bf16.mxu0 0
        %773 = vmatpush1.bf16.xpose.msra.mxu0 0
        %774 = vmatprep.subr.bf16.mxu0 0
        %775 = vmatpush1.bf16.xpose.msra.mxu0 0
        %776 = vmatprep.subr.bf16.mxu0 0
        %777 = vmatpush1.bf16.xpose.msra.mxu0 0
        %778 = vmatprep.subr.bf16.mxu0 0
        %779 = vmatpush1.bf16.xpose.msra.mxu0 0
        %780 = vmatprep.mubr.bf16.mxu0 0
        %781 = vmatmul.mubr.bf16.gmra.mrb[0].mxu0 %v743
        %v782 = vpop.f32.mrb[0].mxu0
        %v783 = vadd.f32 0.0, %v782
        %v784 = vpop.f32.mrb[0].mxu0
        %v785 = vpop.f32.mrb[0].mxu0
        %v786 = vpop.f32.mrb[0].mxu0
        %787 = vdwg.mxu0
        %v788 = vsel %vm680, %v783, -inf
        %789 = vmax.xlane.f32.xlu0 %v788
        %v790 = vpop.xlane.xlu0 %789
        %v791 = vsub.f32 %v783, %v790
        %v792 = vmul.f32 %v791, 1.442695
        %v793 = vpow.pop %v792
        %v794 = vsel %vm680, %v793, 0.0
        %795 = vadd.xlane.f32.xlu0 %v794
        %v796 = vpop.xlane.xlu0 %795
        %v797 = vrcp.pop %v796
        %v798 = vmul.f32 %v793, %v797
        %v799 = vpack.c.bf16 %v798, %v798
        %801 = vrot.lane.b32.xlu0 %v632, 96
        %v802 = vpop.permute.xlu0 %801
        %v805 = vsel %vm680, %v799, 0
        %807 = vmatprep.subr.bf16.mxu0 0
        %808 = vmatpush1.bf16.msra.mxu0 %v802
        %809 = vmatprep.subr.bf16.mxu0 0
        %810 = vmatpush1.bf16.msra.mxu0 0
        %811 = vmatprep.subr.bf16.mxu0 0
        %812 = vmatpush1.bf16.msra.mxu0 0
        %813 = vmatprep.subr.bf16.mxu0 0
        %814 = vmatpush1.bf16.msra.mxu0 0
        %815 = vmatprep.subr.bf16.mxu0 0
        %816 = vmatpush1.bf16.msra.mxu0 0
        %817 = vmatprep.subr.bf16.mxu0 0
        %818 = vmatpush1.bf16.msra.mxu0 0
        %819 = vmatprep.subr.bf16.mxu0 0
        %820 = vmatpush1.bf16.msra.mxu0 0
        %821 = vmatprep.subr.bf16.mxu0 0
        %822 = vmatpush1.bf16.msra.mxu0 0
        %823 = vmatprep.subr.bf16.mxu0 0
        %824 = vmatpush1.bf16.msra.mxu0 0
        %825 = vmatprep.subr.bf16.mxu0 0
        %826 = vmatpush1.bf16.msra.mxu0 0
        %827 = vmatprep.subr.bf16.mxu0 0
        %828 = vmatpush1.bf16.msra.mxu0 0
        %829 = vmatprep.subr.bf16.mxu0 0
        %830 = vmatpush1.bf16.msra.mxu0 0
        %831 = vmatprep.subr.bf16.mxu0 0
        %832 = vmatpush1.bf16.msra.mxu0 0
        %833 = vmatprep.subr.bf16.mxu0 0
        %834 = vmatpush1.bf16.msra.mxu0 0
        %835 = vmatprep.subr.bf16.mxu0 0
        %836 = vmatpush1.bf16.msra.mxu0 0
        %837 = vmatprep.subr.bf16.mxu0 0
        %838 = vmatpush1.bf16.msra.mxu0 0
        %839 = vmatprep.mubr.bf16.mxu0 0
        %840 = vmatmul.mubr.bf16.gmra.mrb[0].mxu0 %v805
        %v841 = vpop.f32.mrb[0].mxu0
        %v842 = vadd.f32 0.0, %v841
        %v843 = vpop.f32.mrb[0].mxu0
        %v844 = vpop.f32.mrb[0].mxu0
        %v845 = vpop.f32.mrb[0].mxu0
        %846 = vdwg.mxu0
        %847 = vrot.lane.b32.xlu0 %v630, 64
        %v848 = vpop.permute.xlu0 %847
        %849 = vrot.lane.b32.xlu0 %v631, 64
        %v850 = vpop.permute.xlu0 %849
        %v852 = vsel %vm633, %v848, 0
        %v855 = vsel %vm633, %v850, 0
        %857 = vmatprep.subr.bf16.mxu0 0
        %858 = vmatpush1.bf16.xpose.msra.mxu0 %v855
        %859 = vmatprep.subr.bf16.mxu0 0
        %860 = vmatpush1.bf16.xpose.msra.mxu0 0
        %861 = vmatprep.subr.bf16.mxu0 0
        %862 = vmatpush1.bf16.xpose.msra.mxu0 0
        %863 = vmatprep.subr.bf16.mxu0 0
        %864 = vmatpush1.bf16.xpose.msra.mxu0 0
        %865 = vmatprep.subr.bf16.mxu0 0
        %866 = vmatpush1.bf16.xpose.msra.mxu0 0
        %867 = vmatprep.subr.bf16.mxu0 0
        %868 = vmatpush1.bf16.xpose.msra.mxu0 0
        %869 = vmatprep.subr.bf16.mxu0 0
        %870 = vmatpush1.bf16.xpose.msra.mxu0 0
        %871 = vmatprep.subr.bf16.mxu0 0
        %872 = vmatpush1.bf16.xpose.msra.mxu0 0
        %873 = vmatprep.subr.bf16.mxu0 0
        %874 = vmatpush1.bf16.xpose.msra.mxu0 0
        %875 = vmatprep.subr.bf16.mxu0 0
        %876 = vmatpush1.bf16.xpose.msra.mxu0 0
        %877 = vmatprep.subr.bf16.mxu0 0
        %878 = vmatpush1.bf16.xpose.msra.mxu0 0
        %879 = vmatprep.subr.bf16.mxu0 0
        %880 = vmatpush1.bf16.xpose.msra.mxu0 0
        %881 = vmatprep.subr.bf16.mxu0 0
        %882 = vmatpush1.bf16.xpose.msra.mxu0 0
        %883 = vmatprep.subr.bf16.mxu0 0
        %884 = vmatpush1.bf16.xpose.msra.mxu0 0
        %885 = vmatprep.subr.bf16.mxu0 0
        %886 = vmatpush1.bf16.xpose.msra.mxu0 0
        %887 = vmatprep.subr.bf16.mxu0 0
        %888 = vmatpush1.bf16.xpose.msra.mxu0 0
        %889 = vmatprep.mubr.bf16.mxu0 0
        %890 = vmatmul.mubr.bf16.gmra.mrb[0].mxu0 %v852
        %v891 = vpop.f32.mrb[0].mxu0
        %v892 = vadd.f32 0.0, %v891
        %v893 = vpop.f32.mrb[0].mxu0
        %v894 = vpop.f32.mrb[0].mxu0
        %v895 = vpop.f32.mrb[0].mxu0
        %896 = vdwg.mxu0
        %v897 = vsel %vm680, %v892, -inf
        %898 = vmax.xlane.f32.xlu0 %v897
        %v899 = vpop.xlane.xlu0 %898
        %v900 = vsub.f32 %v892, %v899
        %v901 = vmul.f32 %v900, 1.442695
        %v902 = vpow.pop %v901
        %v903 = vsel %vm680, %v902, 0.0
        %904 = vadd.xlane.f32.xlu0 %v903
        %v905 = vpop.xlane.xlu0 %904
        %v906 = vrcp.pop %v905
        %v907 = vmul.f32 %v902, %v906
        %v908 = vpack.c.bf16 %v907, %v907
        %909 = vrot.lane.b32.xlu0 %v632, 64
        %v910 = vpop.permute.xlu0 %909
        %v913 = vsel %vm680, %v908, 0
        %915 = vmatprep.subr.bf16.mxu0 0
        %916 = vmatpush1.bf16.msra.mxu0 %v910
        %917 = vmatprep.subr.bf16.mxu0 0
        %918 = vmatpush1.bf16.msra.mxu0 0
        %919 = vmatprep.subr.bf16.mxu0 0
        %920 = vmatpush1.bf16.msra.mxu0 0
        %921 = vmatprep.subr.bf16.mxu0 0
        %922 = vmatpush1.bf16.msra.mxu0 0
        %923 = vmatprep.subr.bf16.mxu0 0
        %924 = vmatpush1.bf16.msra.mxu0 0
        %925 = vmatprep.subr.bf16.mxu0 0
        %926 = vmatpush1.bf16.msra.mxu0 0
        %927 = vmatprep.subr.bf16.mxu0 0
        %928 = vmatpush1.bf16.msra.mxu0 0
        %929 = vmatprep.subr.bf16.mxu0 0
        %930 = vmatpush1.bf16.msra.mxu0 0
        %931 = vmatprep.subr.bf16.mxu0 0
        %932 = vmatpush1.bf16.msra.mxu0 0
        %933 = vmatprep.subr.bf16.mxu0 0
        %934 = vmatpush1.bf16.msra.mxu0 0
        %935 = vmatprep.subr.bf16.mxu0 0
        %936 = vmatpush1.bf16.msra.mxu0 0
        %937 = vmatprep.subr.bf16.mxu0 0
        %938 = vmatpush1.bf16.msra.mxu0 0
        %939 = vmatprep.subr.bf16.mxu0 0
        %940 = vmatpush1.bf16.msra.mxu0 0
        %941 = vmatprep.subr.bf16.mxu0 0
        %942 = vmatpush1.bf16.msra.mxu0 0
        %943 = vmatprep.subr.bf16.mxu0 0
        %944 = vmatpush1.bf16.msra.mxu0 0
        %945 = vmatprep.subr.bf16.mxu0 0
        %946 = vmatpush1.bf16.msra.mxu0 0
        %947 = vmatprep.mubr.bf16.mxu0 0
        %948 = vmatmul.mubr.bf16.gmra.mrb[0].mxu0 %v913
        %v949 = vpop.f32.mrb[0].mxu0
        %v950 = vadd.f32 0.0, %v949
        %v951 = vpop.f32.mrb[0].mxu0
        %v952 = vpop.f32.mrb[0].mxu0
        %v953 = vpop.f32.mrb[0].mxu0
        %954 = vdwg.mxu0
        %955 = vrot.lane.b32.xlu0 %v630, 32
        %v956 = vpop.permute.xlu0 %955
        %957 = vrot.lane.b32.xlu0 %v631, 32
        %v958 = vpop.permute.xlu0 %957
        %v960 = vsel %vm633, %v956, 0
        %v963 = vsel %vm633, %v958, 0
        %965 = vmatprep.subr.bf16.mxu0 0
        %966 = vmatpush1.bf16.xpose.msra.mxu0 %v963
        %967 = vmatprep.subr.bf16.mxu0 0
        %968 = vmatpush1.bf16.xpose.msra.mxu0 0
        %969 = vmatprep.subr.bf16.mxu0 0
        %970 = vmatpush1.bf16.xpose.msra.mxu0 0
        %971 = vmatprep.subr.bf16.mxu0 0
        %972 = vmatpush1.bf16.xpose.msra.mxu0 0
        %973 = vmatprep.subr.bf16.mxu0 0
        %974 = vmatpush1.bf16.xpose.msra.mxu0 0
        %975 = vmatprep.subr.bf16.mxu0 0
        %976 = vmatpush1.bf16.xpose.msra.mxu0 0
        %977 = vmatprep.subr.bf16.mxu0 0
        %978 = vmatpush1.bf16.xpose.msra.mxu0 0
        %979 = vmatprep.subr.bf16.mxu0 0
        %980 = vmatpush1.bf16.xpose.msra.mxu0 0
        %981 = vmatprep.subr.bf16.mxu0 0
        %982 = vmatpush1.bf16.xpose.msra.mxu0 0
        %983 = vmatprep.subr.bf16.mxu0 0
        %984 = vmatpush1.bf16.xpose.msra.mxu0 0
        %985 = vmatprep.subr.bf16.mxu0 0
        %986 = vmatpush1.bf16.xpose.msra.mxu0 0
        %987 = vmatprep.subr.bf16.mxu0 0
        %988 = vmatpush1.bf16.xpose.msra.mxu0 0
        %989 = vmatprep.subr.bf16.mxu0 0
        %990 = vmatpush1.bf16.xpose.msra.mxu0 0
        %991 = vmatprep.subr.bf16.mxu0 0
        %992 = vmatpush1.bf16.xpose.msra.mxu0 0
        %993 = vmatprep.subr.bf16.mxu0 0
        %994 = vmatpush1.bf16.xpose.msra.mxu0 0
        %995 = vmatprep.subr.bf16.mxu0 0
        %996 = vmatpush1.bf16.xpose.msra.mxu0 0
        %997 = vmatprep.mubr.bf16.mxu0 0
        %998 = vmatmul.mubr.bf16.gmra.mrb[0].mxu0 %v960
        %v999 = vpop.f32.mrb[0].mxu0
        %v1000 = vadd.f32 0.0, %v999
        %v1001 = vpop.f32.mrb[0].mxu0
        %v1002 = vpop.f32.mrb[0].mxu0
        %v1003 = vpop.f32.mrb[0].mxu0
        %1004 = vdwg.mxu0
        %v1005 = vsel %vm680, %v1000, -inf
        %1006 = vmax.xlane.f32.xlu0 %v1005
        %v1007 = vpop.xlane.xlu0 %1006
        %v1008 = vsub.f32 %v1000, %v1007
        %v1009 = vmul.f32 %v1008, 1.442695
        %v1010 = vpow.pop %v1009
        %v1011 = vsel %vm680, %v1010, 0.0
        %1012 = vadd.xlane.f32.xlu0 %v1011
        %v1013 = vpop.xlane.xlu0 %1012
        %v1014 = vrcp.pop %v1013
        %v1015 = vmul.f32 %v1010, %v1014
        %v1016 = vpack.c.bf16 %v1015, %v1015
        %1017 = vrot.lane.b32.xlu0 %v632, 32
        %v1018 = vpop.permute.xlu0 %1017
        %v1021 = vsel %vm680, %v1016, 0
        %1023 = vmatprep.subr.bf16.mxu0 0
        %1024 = vmatpush1.bf16.msra.mxu0 %v1018
        %1025 = vmatprep.subr.bf16.mxu0 0
        %1026 = vmatpush1.bf16.msra.mxu0 0
        %1027 = vmatprep.subr.bf16.mxu0 0
        %1028 = vmatpush1.bf16.msra.mxu0 0
        %1029 = vmatprep.subr.bf16.mxu0 0
        %1030 = vmatpush1.bf16.msra.mxu0 0
        %1031 = vmatprep.subr.bf16.mxu0 0
        %1032 = vmatpush1.bf16.msra.mxu0 0
        %1033 = vmatprep.subr.bf16.mxu0 0
        %1034 = vmatpush1.bf16.msra.mxu0 0
        %1035 = vmatprep.subr.bf16.mxu0 0
        %1036 = vmatpush1.bf16.msra.mxu0 0
        %1037 = vmatprep.subr.bf16.mxu0 0
        %1038 = vmatpush1.bf16.msra.mxu0 0
        %1039 = vmatprep.subr.bf16.mxu0 0
        %1040 = vmatpush1.bf16.msra.mxu0 0
        %1041 = vmatprep.subr.bf16.mxu0 0
        %1042 = vmatpush1.bf16.msra.mxu0 0
        %1043 = vmatprep.subr.bf16.mxu0 0
        %1044 = vmatpush1.bf16.msra.mxu0 0
        %1045 = vmatprep.subr.bf16.mxu0 0
        %1046 = vmatpush1.bf16.msra.mxu0 0
        %1047 = vmatprep.subr.bf16.mxu0 0
        %1048 = vmatpush1.bf16.msra.mxu0 0
        %1049 = vmatprep.subr.bf16.mxu0 0
        %1050 = vmatpush1.bf16.msra.mxu0 0
        %1051 = vmatprep.subr.bf16.mxu0 0
        %1052 = vmatpush1.bf16.msra.mxu0 0
        %1053 = vmatprep.subr.bf16.mxu0 0
        %1054 = vmatpush1.bf16.msra.mxu0 0
        %1055 = vmatprep.mubr.bf16.mxu0 0
        %1056 = vmatmul.mubr.bf16.gmra.mrb[0].mxu0 %v1021
        %v1057 = vpop.f32.mrb[0].mxu0
        %v1058 = vadd.f32 0.0, %v1057
        %v1059 = vpop.f32.mrb[0].mxu0
        %v1060 = vpop.f32.mrb[0].mxu0
        %v1061 = vpop.f32.mrb[0].mxu0
        %1062 = vdwg.mxu0
        %1064 = vrot.lane.b32.xlu0 %v842, 32
        %v1065 = vpop.permute.xlu0 %1064
        %1068 = vrot.lane.b32.xlu0 %v950, 64
        %v1069 = vpop.permute.xlu0 %1068
        %1072 = vrot.lane.b32.xlu0 %v1058, 96
        %v1073 = vpop.permute.xlu0 %1072
        %v1075 = vsel %vm633, %v731, %v1065
        %vm1076 = vcmask 523264
        %v1077 = vsel %vm1076, %v1075, %v1069
        %vm1078 = vcmask 785408
        %v1079 = vsel %vm1078, %v1077, %v1073
        %1080 = vst [vmem:[%s360] sm:$0xff] %v1079
        %s1081 = sand.u32 %s172, 1
        %s1082 = scalar_lea.sflag [#allocation4], %s1081
        %s1083 = sand.u32 %s172, 1
        %s1084 = smul.addr %s1083, 8
        %s1085 = scalar_lea.vmem [#allocation13], %s1084
        // Predicated region
        $region69: #{fused_cross_attention.1} parent=43 // pred_check
          %p1086 = pneg %p182
        $region70: #{fused_cross_attention.1} parent=43 // pred_check_branch
          %1088 = sbr.rel (%p1086) target = $region72
        $region71: #{fused_cross_attention.1} parent=43 // pred_region
          %s1090 = ssub.s32 128, 128
          %1091 = vsyncadd %s1082, %s1090
          %s1092 = smul.addr %s28, 128
          %s1093 = scalar_lea.hbm %s6, %s1092
          %s1095 = sshll.u32 %s1085, 4
          %s1096 = int_to_ptr.vmem [resolvable:$true] %s1095
          %1098 = dma.vmem_to_hbm [thread:$0]  %s1096, 128, %s1093, %s1082
        $region72: #{fused_cross_attention.1} parent=43 // pred_fallthru
          _
      $region44: #{fused_cross_attention.1} parent=5 // pred_fallthru
        _
      %p1099 = scmp.le.s32.totalorder 2, %s23
      // Predicated region
      $region73: #{fused_cross_attention.1} parent=5 // pred_check
        %p1100 = pneg %p1099
      $region74: #{fused_cross_attention.1} parent=5 // pred_check_branch
        %1102 = sbr.rel (%p1100) target = $region76
      $region75: #{fused_cross_attention.1} parent=5 // pred_region
        %s1103 = ssub.s32 %s23, 2
        // Predicated region
        $region77: #{fused_cross_attention.1} parent=75 // pred_check
          %p1104 = pneg %p188
        $region78: #{fused_cross_attention.1} parent=75 // pred_check_branch
          %1106 = sbr.rel (%p1104) target = $region80
        $region79: #{fused_cross_attention.1} parent=75 // pred_region
          %s1107 = sand.u32 %s173, 1
          %s1108 = scalar_lea.sflag [#allocation4], %s1107
          %s1109 = sand.u32 %s173, 1
          %s1110 = smul.addr %s1109, 8
          %s1111 = scalar_lea.vmem [#allocation13], %s1110
          %1112 = dma.done %s1108, 128
        $region80: #{fused_cross_attention.1} parent=75 // pred_fallthru
          _
      $region76: #{fused_cross_attention.1} parent=5 // pred_fallthru
        _
    $region6: #{fused_cross_attention.1} parent=1 // loop_footer
      %s27 = sadd.s32 1, %s23
    $region7: #{fused_cross_attention.1} parent=1 // loop_footer_branch
      %22 = sbr.rel target = $region3
    $region8: #{fused_cross_attention.1} parent=1 // loop_exit
      _
    %1113 = vsyncpa [#allocation3], 1
    %s1114 = scalar_lea.sflag [#allocation3], 1
    %1115 = vsyncpa %s1114, 1
    %1116 = vsyncpa [#allocation6], 1
    %s1117 = scalar_lea.sflag [#allocation6], 1
    %1118 = vsyncpa %s1117, 1
    %1119 = vsyncpa [#allocation9], 1
    %1120 = vsyncpa [#allocation12], 1
    %1121 = vsyncpa [#allocation4], 1
    %s1122 = scalar_lea.sflag [#allocation4], 1
    %1123 = vsyncpa %s1122, 1

</llo_original>
